<compile_context>
chip_gen: v6e
topology: v6e:2x2x1
jax: 0.10.0
libtpu: 0.0.40
codegen_flags: <defaults>
</compile_context>

<pallas_src>
import functools

import jax
import jax.numpy as jnp
import numpy as np
from jax.experimental import pallas as pl
from jax.experimental.pallas import tpu as pltpu


def _round_up(x, m):
    return (x + m - 1) // m * m


def unet_block_kernel(x_ref, lnw_ref, lnb_ref, mask_ref, w1_ref, b1_ref,
                      w2_ref, b2_ref, o_ref, ybuf_ref, patch_ref,
                      *, wp, margin, inv_n):
    # x_ref:    (1, Cin_p, L_pad)   one sample, padded flattened spatial grid
    # lnw/lnb:  (Cin_p, L_pad)      LayerNorm affine params (zero on all pads)
    # mask_ref: (1, L_pad)          1.0 on interior HxW positions, 0.0 on pads
    # w1_ref:   (Cout_p, 9*Cin_p)   fused im2col weights, cols = (kh, kw, ci)
    # w2_ref:   (Cout_p, 9*Cout_p)
    # b1/b2:    (Cout_p, 1)
    # o_ref:    (1, Cout_p, L_pad)
    # ybuf_ref: (Cmax, L_pad + 2*margin) staging buffer with lane halo
    # patch_ref:(9*Cmax, L_pad)     im2col patch fed to the MXU
    cin_p = x_ref.shape[1]
    cout_p = o_ref.shape[1]
    l_pad = x_ref.shape[2]

    # Zero the staging buffer so its halo margins read as conv zero padding.
    ybuf_ref[...] = jnp.zeros(ybuf_ref.shape, ybuf_ref.dtype)

    x = x_ref[0]                                        # (cin_p, l_pad)

    # ---- LayerNorm over (C, H, W): biased variance, eps=1e-5 ----
    # Every pad position (channel pad, spatial border, lane pad) holds 0, so
    # plain sums over the padded tile equal sums over the real elements.
    s1 = jnp.sum(x)
    s2 = jnp.sum(x * x)
    mean = s1 * inv_n
    var = s2 * inv_n - mean * mean
    inv_std = jax.lax.rsqrt(var + 1e-5)
    # lnw/lnb are zero-filled on pads -> y is exactly 0 on the conv halo.
    y = (x - mean) * inv_std * lnw_ref[...] + lnb_ref[...]

    def silu(z):
        # sigmoid(z) = 0.5*tanh(z/2) + 0.5  (EUP tanh, no VALU divide)
        return z * (0.5 * jnp.tanh(0.5 * z) + 0.5)

    def conv3x3(inp, cin, w_ref, b_ref):
        # Stage the padded-grid input into the margin buffer (lane-aligned
        # store), gather the 9 shifted taps with static slices into one
        # (9*cin, l_pad) im2col patch, then a single fused MXU matmul.
        ybuf_ref[0:cin, margin:margin + l_pad] = inp
        for kh in range(3):
            for kw in range(3):
                k = kh * 3 + kw
                off = (kh - 1) * wp + (kw - 1)
                patch_ref[k * cin:(k + 1) * cin, :] = ybuf_ref[
                    0:cin, margin + off:margin + off + l_pad]
        acc = jnp.dot(w_ref[...], patch_ref[0:9 * cin, :],
                      preferred_element_type=jnp.float32)
        return acc + b_ref[...]                         # (cout_p,1) broadcast

    h1 = silu(conv3x3(y, cin_p, w1_ref, b1_ref))
    # Re-zero the spatial halo / lane pad so conv2 sees proper zero padding.
    h1 = jnp.where(mask_ref[...] > 0.5, h1, 0.0)
    h2 = silu(conv3x3(h1, cout_p, w2_ref, b2_ref))
    o_ref[0] = h2                                       # lane-dense store


def unet_block_forward(x_nchw, ln_w, ln_b, w1, b1, w2, b2):
    """x_nchw: (B, Cin, H, W) float32.  Returns (B, Cout, H, W) float32."""
    B, Cin, H, W = x_nchw.shape
    Cout = w1.shape[0]
    HP, WP = H + 2, W + 2                      # spatially padded grid
    L = HP * WP
    L_pad = _round_up(L, 128)                  # lane-dense flattened spatial
    Cin_p = _round_up(Cin, 8)
    Cout_p = _round_up(Cout, 8)
    Cmax = max(Cin_p, Cout_p)
    MARGIN = 128                               # lane-aligned halo for 9 taps
    assert WP + 1 <= MARGIN, "W too large for the fixed 128-lane margin"

    # ---- relayout glue: pads + reshapes only (no transposes of x) ----
    def spatial_flatten(a, cpad):
        # (..., C, H, W) -> channel pad to cpad, 1px spatial border, flatten
        # spatial, zero-pad lanes to L_pad.
        lead = a.shape[:-3]
        a = jnp.pad(a, tuple((0, 0) for _ in lead)
                    + ((0, cpad - a.shape[-3]), (1, 1), (1, 1)))
        a = a.reshape(lead + (cpad, L))
        return jnp.pad(a, tuple((0, 0) for _ in lead) + ((0, 0), (0, L_pad - L)))

    xp = spatial_flatten(x_nchw, Cin_p)        # (B, Cin_p, L_pad)
    lnw_p = spatial_flatten(ln_w, Cin_p)       # (Cin_p, L_pad)
    lnb_p = spatial_flatten(ln_b, Cin_p)

    # interior mask on the padded flattened spatial axis (1 inside HxW).
    m_idx = jnp.arange(L_pad)
    py, px = m_idx // WP, m_idx % WP
    interior = (py >= 1) & (py <= H) & (px >= 1) & (px <= W) & (m_idx < L)
    mask_p = interior.astype(jnp.float32).reshape(1, L_pad)

    def prep_w(w, cin, cin_p, cout_p):
        # OIHW -> (cout_p, 9*cin_p), column order (kh, kw, ci).
        cout = w.shape[0]
        wt = jnp.transpose(w, (0, 2, 3, 1))                   # (cout,3,3,cin)
        wt = jnp.pad(wt, ((0, cout_p - cout), (0, 0), (0, 0), (0, cin_p - cin)))
        return wt.reshape(cout_p, 9 * cin_p)

    w1_p = prep_w(w1, Cin, Cin_p, Cout_p)
    w2_p = prep_w(w2, Cout, Cout_p, Cout_p)
    b1_p = jnp.pad(b1, (0, Cout_p - Cout)).reshape(Cout_p, 1)
    b2_p = jnp.pad(b2, (0, Cout_p - Cout)).reshape(Cout_p, 1)

    kernel = functools.partial(unet_block_kernel, wp=WP, margin=MARGIN,
                               inv_n=1.0 / float(Cin * H * W))

    # TODO(synk): for production UNet sizes (C~128-512, H=W~32-64) add a
    # spatial grid axis with a 2-row halo plus a separate LayerNorm-stats pass
    # (LN statistics span the whole sample so a single-pass kernel cannot tile
    # spatially), and cast matmul operands to bf16 on v6e/v7x; kept f32 +
    # whole-sample tiles here to match PyTorch numerics at these small shapes.
    out = pl.pallas_call(
        kernel,
        out_shape=jax.ShapeDtypeStruct((B, Cout_p, L_pad), jnp.float32),
        grid=(B,),
        in_specs=[
            pl.BlockSpec((1, Cin_p, L_pad), lambda b: (b, 0, 0)),
            pl.BlockSpec((Cin_p, L_pad), lambda b: (0, 0)),
            pl.BlockSpec((Cin_p, L_pad), lambda b: (0, 0)),
            pl.BlockSpec((1, L_pad), lambda b: (0, 0)),
            pl.BlockSpec((Cout_p, 9 * Cin_p), lambda b: (0, 0)),
            pl.BlockSpec((Cout_p, 1), lambda b: (0, 0)),
            pl.BlockSpec((Cout_p, 9 * Cout_p), lambda b: (0, 0)),
            pl.BlockSpec((Cout_p, 1), lambda b: (0, 0)),
        ],
        out_specs=pl.BlockSpec((1, Cout_p, L_pad), lambda b: (b, 0, 0)),
        scratch_shapes=[
            pltpu.VMEM((Cmax, L_pad + 2 * MARGIN), jnp.float32),  # staging
            pltpu.VMEM((9 * Cmax, L_pad), jnp.float32),           # im2col
        ],
        compiler_params=pltpu.CompilerParams(
            dimension_semantics=("parallel",),
            vmem_limit_bytes=32 * 1024 * 1024),
    )(xp, lnw_p, lnb_p, mask_p, w1_p, b1_p, w2_p, b2_p)

    out = out[:, :Cout, :L].reshape(B, Cout, HP, WP)
    return out[:, :, 1:H + 1, 1:W + 1]


def unet_block_reference(x, ln_w, ln_b, w1, b1, w2, b2):
    """Pure-JAX reference (mirrors the PyTorch module) for verification."""
    eps = 1e-5
    m = jnp.mean(x, axis=(1, 2, 3), keepdims=True)
    v = jnp.mean((x - m) ** 2, axis=(1, 2, 3), keepdims=True)
    y = (x - m) / jnp.sqrt(v + eps) * ln_w[None] + ln_b[None]

    def conv(z, w, b):
        o = jax.lax.conv_general_dilated(
            z, w, window_strides=(1, 1), padding=((1, 1), (1, 1)),
            dimension_numbers=("NCHW", "OIHW", "NCHW"))
        return o + b[None, :, None, None]

    def silu(z):
        return z * jax.nn.sigmoid(z)

    return silu(conv(silu(conv(y, w1, b1)), w2, b2))


if __name__ == "__main__":
    B, Cin, Cout, H, W = 2, 4, 8, 16, 16

    key = jax.random.PRNGKey(0)
    ks = jax.random.split(key, 7)
    x = jax.random.normal(ks[0], (B, Cin, H, W), jnp.float32)
    ln_w = 1.0 + 0.05 * jax.random.normal(ks[1], (Cin, H, W), jnp.float32)
    ln_b = 0.05 * jax.random.normal(ks[2], (Cin, H, W), jnp.float32)
    w1 = 0.1 * jax.random.normal(ks[3], (Cout, Cin, 3, 3), jnp.float32)
    b1 = 0.05 * jax.random.normal(ks[4], (Cout,), jnp.float32)
    w2 = 0.1 * jax.random.normal(ks[5], (Cout, Cout, 3, 3), jnp.float32)
    b2 = 0.05 * jax.random.normal(ks[6], (Cout,), jnp.float32)

    out = jax.block_until_ready(unet_block_forward(x, ln_w, ln_b, w1, b1, w2, b2))
    ref = jax.block_until_ready(unet_block_reference(x, ln_w, ln_b, w1, b1, w2, b2))

    assert out.shape == (B, Cout, H, W)
    np.testing.assert_allclose(np.asarray(out), np.asarray(ref),
                               rtol=1e-4, atol=1e-4)
    print("KERNEL_OK")
</pallas_src>

<mosaic_0001>
module attributes {stable_mosaic.version = 11 : i64} {
  func.func @unet_block_kernel(%arg0: i32, %arg1: memref<1x8x384xf32, #tpu.memory_space<vmem>>, %arg2: memref<8x384xf32, #tpu.memory_space<vmem>>, %arg3: memref<8x384xf32, #tpu.memory_space<vmem>>, %arg4: memref<1x384xf32, #tpu.memory_space<vmem>>, %arg5: memref<8x72xf32, #tpu.memory_space<vmem>>, %arg6: memref<8x1xf32, #tpu.memory_space<vmem>>, %arg7: memref<8x72xf32, #tpu.memory_space<vmem>>, %arg8: memref<8x1xf32, #tpu.memory_space<vmem>>, %arg9: memref<1x8x384xf32, #tpu.memory_space<vmem>>, %arg10: memref<8x640xf32, #tpu.memory_space<vmem>>, %arg11: memref<72x384xf32, #tpu.memory_space<vmem>>) attributes {dimension_semantics = [#tpu.dimension_semantics<parallel>], iteration_bounds = array<i64: 2>, scalar_prefetch = 0 : i64, scratch_operands = 2 : i64, tpu.core_type = #tpu.core_type<tc>, window_params = [{transform_indices = @transform_0, window_bounds = array<i64: 1, 8, 384>}, {pipeline_mode = #tpu.pipeline_mode<synchronous>, transform_indices = @transform_1, window_bounds = array<i64: 8, 384>}, {pipeline_mode = #tpu.pipeline_mode<synchronous>, transform_indices = @transform_2, window_bounds = array<i64: 8, 384>}, {pipeline_mode = #tpu.pipeline_mode<synchronous>, transform_indices = @transform_3, window_bounds = array<i64: 1, 384>}, {pipeline_mode = #tpu.pipeline_mode<synchronous>, transform_indices = @transform_4, window_bounds = array<i64: 8, 72>}, {pipeline_mode = #tpu.pipeline_mode<synchronous>, transform_indices = @transform_5, window_bounds = array<i64: 8, 1>}, {pipeline_mode = #tpu.pipeline_mode<synchronous>, transform_indices = @transform_6, window_bounds = array<i64: 8, 72>}, {pipeline_mode = #tpu.pipeline_mode<synchronous>, transform_indices = @transform_7, window_bounds = array<i64: 8, 1>}, {transform_indices = @transform_8, window_bounds = array<i64: 1, 8, 384>}]} {
    %cst = arith.constant 0.000000e+00 : f32
    %0 = vector.broadcast %cst : f32 to vector<8x640xf32>
    %c0 = arith.constant 0 : index
    %c0_0 = arith.constant 0 : index
    %1 = vector.load %arg10[%c0, %c0_0] : memref<8x640xf32, #tpu.memory_space<vmem>>, vector<8x640xf32>
    tpu.vector_store %arg10[%c0, %c0_0], %0 {strides = array<i32>} : memref<8x640xf32, #tpu.memory_space<vmem>>, vector<8x640xf32>,
    %c0_1 = arith.constant 0 : index
    %c0_2 = arith.constant 0 : index
    %c0_3 = arith.constant 0 : index
    %2 = vector.load %arg1[%c0_1, %c0_2, %c0_3] : memref<1x8x384xf32, #tpu.memory_space<vmem>>, vector<1x8x384xf32>
    %3 = vector.shape_cast %2 : vector<1x8x384xf32> to vector<8x384xf32>
    %4 = vector.shape_cast %3 : vector<8x384xf32> to vector<1x8x384xf32>
    %cst_4 = arith.constant dense<0.000000e+00> : vector<1xf32>
    %5 = vector.multi_reduction <add>, %4, %cst_4 [1, 2] : vector<1x8x384xf32> to vector<1xf32>
    %6 = vector.shape_cast %5 : vector<1xf32> to vector<1x1x1xf32>
    %7 = vector.extract %6[0, 0, 0] : f32 from vector<1x1x1xf32>
    %8 = arith.mulf %3, %3 : vector<8x384xf32>
    %9 = vector.shape_cast %8 : vector<8x384xf32> to vector<1x8x384xf32>
    %cst_5 = arith.constant dense<0.000000e+00> : vector<1xf32>
    %10 = vector.multi_reduction <add>, %9, %cst_5 [1, 2] : vector<1x8x384xf32> to vector<1xf32>
    %11 = vector.shape_cast %10 : vector<1xf32> to vector<1x1x1xf32>
    %12 = vector.extract %11[0, 0, 0] : f32 from vector<1x1x1xf32>
    %cst_6 = arith.constant 9.765625E-4 : f32
    %13 = arith.mulf %7, %cst_6 : f32
    %cst_7 = arith.constant 9.765625E-4 : f32
    %14 = arith.mulf %12, %cst_7 : f32
    %15 = arith.mulf %13, %13 : f32
    %16 = arith.subf %14, %15 : f32
    %cst_8 = arith.constant 9.99999974E-6 : f32
    %17 = arith.addf %16, %cst_8 : f32
    %18 = math.rsqrt %17 : f32
    %19 = vector.broadcast %13 : f32 to vector<8x384xf32>
    %20 = arith.subf %3, %19 : vector<8x384xf32>
    %21 = vector.broadcast %18 : f32 to vector<8x384xf32>
    %22 = arith.mulf %20, %21 : vector<8x384xf32>
    %c0_9 = arith.constant 0 : index
    %c0_10 = arith.constant 0 : index
    %23 = vector.load %arg2[%c0_9, %c0_10] : memref<8x384xf32, #tpu.memory_space<vmem>>, vector<8x384xf32>
    %24 = arith.mulf %22, %23 : vector<8x384xf32>
    %c0_11 = arith.constant 0 : index
    %c0_12 = arith.constant 0 : index
    %25 = vector.load %arg3[%c0_11, %c0_12] : memref<8x384xf32, #tpu.memory_space<vmem>>, vector<8x384xf32>
    %26 = arith.addf %24, %25 : vector<8x384xf32>
    %c0_13 = arith.constant 0 : index
    %c128 = arith.constant 128 : index
    %27 = vector.load %arg10[%c0_13, %c128] : memref<8x640xf32, #tpu.memory_space<vmem>>, vector<8x384xf32>
    tpu.vector_store %arg10[%c0_13, %c128], %26 {strides = array<i32>} : memref<8x640xf32, #tpu.memory_space<vmem>>, vector<8x384xf32>,
    %c0_14 = arith.constant 0 : index
    %c109 = arith.constant 109 : index
    %28 = vector.load %arg10[%c0_14, %c109] : memref<8x640xf32, #tpu.memory_space<vmem>>, vector<8x384xf32>
    %c0_15 = arith.constant 0 : index
    %c0_16 = arith.constant 0 : index
    %29 = vector.load %arg11[%c0_15, %c0_16] : memref<72x384xf32, #tpu.memory_space<vmem>>, vector<8x384xf32>
    tpu.vector_store %arg11[%c0_15, %c0_16], %28 {strides = array<i32>} : memref<72x384xf32, #tpu.memory_space<vmem>>, vector<8x384xf32>,
    %c0_17 = arith.constant 0 : index
    %c110 = arith.constant 110 : index
    %30 = vector.load %arg10[%c0_17, %c110] : memref<8x640xf32, #tpu.memory_space<vmem>>, vector<8x384xf32>
    %c8 = arith.constant 8 : index
    %c0_18 = arith.constant 0 : index
    %31 = vector.load %arg11[%c8, %c0_18] : memref<72x384xf32, #tpu.memory_space<vmem>>, vector<8x384xf32>
    tpu.vector_store %arg11[%c8, %c0_18], %30 {strides = array<i32>} : memref<72x384xf32, #tpu.memory_space<vmem>>, vector<8x384xf32>,
    %c0_19 = arith.constant 0 : index
    %c111 = arith.constant 111 : index
    %32 = vector.load %arg10[%c0_19, %c111] : memref<8x640xf32, #tpu.memory_space<vmem>>, vector<8x384xf32>
    %c16 = arith.constant 16 : index
    %c0_20 = arith.constant 0 : index
    %33 = vector.load %arg11[%c16, %c0_20] : memref<72x384xf32, #tpu.memory_space<vmem>>, vector<8x384xf32>
    tpu.vector_store %arg11[%c16, %c0_20], %32 {strides = array<i32>} : memref<72x384xf32, #tpu.memory_space<vmem>>, vector<8x384xf32>,
    %c0_21 = arith.constant 0 : index
    %c127 = arith.constant 127 : index
    %34 = vector.load %arg10[%c0_21, %c127] : memref<8x640xf32, #tpu.memory_space<vmem>>, vector<8x384xf32>
    %c24 = arith.constant 24 : index
    %c0_22 = arith.constant 0 : index
    %35 = vector.load %arg11[%c24, %c0_22] : memref<72x384xf32, #tpu.memory_space<vmem>>, vector<8x384xf32>
    tpu.vector_store %arg11[%c24, %c0_22], %34 {strides = array<i32>} : memref<72x384xf32, #tpu.memory_space<vmem>>, vector<8x384xf32>,
    %c0_23 = arith.constant 0 : index
    %c128_24 = arith.constant 128 : index
    %36 = vector.load %arg10[%c0_23, %c128_24] : memref<8x640xf32, #tpu.memory_space<vmem>>, vector<8x384xf32>
    %c32 = arith.constant 32 : index
    %c0_25 = arith.constant 0 : index
    %37 = vector.load %arg11[%c32, %c0_25] : memref<72x384xf32, #tpu.memory_space<vmem>>, vector<8x384xf32>
    tpu.vector_store %arg11[%c32, %c0_25], %36 {strides = array<i32>} : memref<72x384xf32, #tpu.memory_space<vmem>>, vector<8x384xf32>,
    %c0_26 = arith.constant 0 : index
    %c129 = arith.constant 129 : index
    %38 = vector.load %arg10[%c0_26, %c129] : memref<8x640xf32, #tpu.memory_space<vmem>>, vector<8x384xf32>
    %c40 = arith.constant 40 : index
    %c0_27 = arith.constant 0 : index
    %39 = vector.load %arg11[%c40, %c0_27] : memref<72x384xf32, #tpu.memory_space<vmem>>, vector<8x384xf32>
    tpu.vector_store %arg11[%c40, %c0_27], %38 {strides = array<i32>} : memref<72x384xf32, #tpu.memory_space<vmem>>, vector<8x384xf32>,
    %c0_28 = arith.constant 0 : index
    %c145 = arith.constant 145 : index
    %40 = vector.load %arg10[%c0_28, %c145] : memref<8x640xf32, #tpu.memory_space<vmem>>, vector<8x384xf32>
    %c48 = arith.constant 48 : index
    %c0_29 = arith.constant 0 : index
    %41 = vector.load %arg11[%c48, %c0_29] : memref<72x384xf32, #tpu.memory_space<vmem>>, vector<8x384xf32>
    tpu.vector_store %arg11[%c48, %c0_29], %40 {strides = array<i32>} : memref<72x384xf32, #tpu.memory_space<vmem>>, vector<8x384xf32>,
    %c0_30 = arith.constant 0 : index
    %c146 = arith.constant 146 : index
    %42 = vector.load %arg10[%c0_30, %c146] : memref<8x640xf32, #tpu.memory_space<vmem>>, vector<8x384xf32>
    %c56 = arith.constant 56 : index
    %c0_31 = arith.constant 0 : index
    %43 = vector.load %arg11[%c56, %c0_31] : memref<72x384xf32, #tpu.memory_space<vmem>>, vector<8x384xf32>
    tpu.vector_store %arg11[%c56, %c0_31], %42 {strides = array<i32>} : memref<72x384xf32, #tpu.memory_space<vmem>>, vector<8x384xf32>,
    %c0_32 = arith.constant 0 : index
    %c147 = arith.constant 147 : index
    %44 = vector.load %arg10[%c0_32, %c147] : memref<8x640xf32, #tpu.memory_space<vmem>>, vector<8x384xf32>
    %c64 = arith.constant 64 : index
    %c0_33 = arith.constant 0 : index
    %45 = vector.load %arg11[%c64, %c0_33] : memref<72x384xf32, #tpu.memory_space<vmem>>, vector<8x384xf32>
    tpu.vector_store %arg11[%c64, %c0_33], %44 {strides = array<i32>} : memref<72x384xf32, #tpu.memory_space<vmem>>, vector<8x384xf32>,
    %c0_34 = arith.constant 0 : index
    %c0_35 = arith.constant 0 : index
    %46 = vector.load %arg5[%c0_34, %c0_35] : memref<8x72xf32, #tpu.memory_space<vmem>>, vector<8x72xf32>
    %c0_36 = arith.constant 0 : index
    %c0_37 = arith.constant 0 : index
    %47 = vector.load %arg11[%c0_36, %c0_37] : memref<72x384xf32, #tpu.memory_space<vmem>>, vector<72x384xf32>
    %cst_38 = arith.constant dense<0.000000e+00> : vector<8x384xf32>
    %48 = tpu.matmul %46, %47, %cst_38 {dimension_numbers = #tpu.dot_dimension_numbers<[1], [0], [0], [1], [0, 0, 1, 1], [], []>} : vector<8x72xf32>, vector<72x384xf32>, vector<8x384xf32> -> vector<8x384xf32>
    %c0_39 = arith.constant 0 : index
    %c0_40 = arith.constant 0 : index
    %49 = vector.load %arg6[%c0_39, %c0_40] : memref<8x1xf32, #tpu.memory_space<vmem>>, vector<8x1xf32>
    %50 = vector.broadcast %49 : vector<8x1xf32> to vector<8x384xf32>
    %51 = arith.addf %48, %50 : vector<8x384xf32>
    %cst_41 = arith.constant 5.000000e-01 : f32
    %52 = vector.broadcast %cst_41 : f32 to vector<8x384xf32>
    %53 = arith.mulf %52, %51 : vector<8x384xf32>
    %54 = math.tanh %53 : vector<8x384xf32>
    %cst_42 = arith.constant 5.000000e-01 : f32
    %55 = vector.broadcast %cst_42 : f32 to vector<8x384xf32>
    %56 = arith.mulf %55, %54 : vector<8x384xf32>
    %cst_43 = arith.constant 5.000000e-01 : f32
    %57 = vector.broadcast %cst_43 : f32 to vector<8x384xf32>
    %58 = arith.addf %56, %57 : vector<8x384xf32>
    %59 = arith.mulf %51, %58 : vector<8x384xf32>
    %c0_44 = arith.constant 0 : index
    %c0_45 = arith.constant 0 : index
    %60 = vector.load %arg4[%c0_44, %c0_45] : memref<1x384xf32, #tpu.memory_space<vmem>>, vector<1x384xf32>
    %cst_46 = arith.constant 5.000000e-01 : f32
    %61 = vector.broadcast %cst_46 : f32 to vector<1x384xf32>
    %62 = arith.cmpf ogt, %60, %61 : vector<1x384xf32>
    %cst_47 = arith.constant 0.000000e+00 : f32
    %63 = vector.shape_cast %62 : vector<1x384xi1> to vector<1x384xi1>
    %64 = vector.broadcast %63 : vector<1x384xi1> to vector<8x384xi1>
    %65 = vector.broadcast %cst_47 : f32 to vector<8x384xf32>
    %66 = arith.select %64, %59, %65 : vector<8x384xi1>, vector<8x384xf32>
    %c0_48 = arith.constant 0 : index
    %c128_49 = arith.constant 128 : index
    %67 = vector.load %arg10[%c0_48, %c128_49] : memref<8x640xf32, #tpu.memory_space<vmem>>, vector<8x384xf32>
    tpu.vector_store %arg10[%c0_48, %c128_49], %66 {strides = array<i32>} : memref<8x640xf32, #tpu.memory_space<vmem>>, vector<8x384xf32>,
    %c0_50 = arith.constant 0 : index
    %c109_51 = arith.constant 109 : index
    %68 = vector.load %arg10[%c0_50, %c109_51] : memref<8x640xf32, #tpu.memory_space<vmem>>, vector<8x384xf32>
    %c0_52 = arith.constant 0 : index
    %c0_53 = arith.constant 0 : index
    %69 = vector.load %arg11[%c0_52, %c0_53] : memref<72x384xf32, #tpu.memory_space<vmem>>, vector<8x384xf32>
    tpu.vector_store %arg11[%c0_52, %c0_53], %68 {strides = array<i32>} : memref<72x384xf32, #tpu.memory_space<vmem>>, vector<8x384xf32>,
    %c0_54 = arith.constant 0 : index
    %c110_55 = arith.constant 110 : index
    %70 = vector.load %arg10[%c0_54, %c110_55] : memref<8x640xf32, #tpu.memory_space<vmem>>, vector<8x384xf32>
    %c8_56 = arith.constant 8 : index
    %c0_57 = arith.constant 0 : index
    %71 = vector.load %arg11[%c8_56, %c0_57] : memref<72x384xf32, #tpu.memory_space<vmem>>, vector<8x384xf32>
    tpu.vector_store %arg11[%c8_56, %c0_57], %70 {strides = array<i32>} : memref<72x384xf32, #tpu.memory_space<vmem>>, vector<8x384xf32>,
    %c0_58 = arith.constant 0 : index
    %c111_59 = arith.constant 111 : index
    %72 = vector.load %arg10[%c0_58, %c111_59] : memref<8x640xf32, #tpu.memory_space<vmem>>, vector<8x384xf32>
    %c16_60 = arith.constant 16 : index
    %c0_61 = arith.constant 0 : index
    %73 = vector.load %arg11[%c16_60, %c0_61] : memref<72x384xf32, #tpu.memory_space<vmem>>, vector<8x384xf32>
    tpu.vector_store %arg11[%c16_60, %c0_61], %72 {strides = array<i32>} : memref<72x384xf32, #tpu.memory_space<vmem>>, vector<8x384xf32>,
    %c0_62 = arith.constant 0 : index
    %c127_63 = arith.constant 127 : index
    %74 = vector.load %arg10[%c0_62, %c127_63] : memref<8x640xf32, #tpu.memory_space<vmem>>, vector<8x384xf32>
    %c24_64 = arith.constant 24 : index
    %c0_65 = arith.constant 0 : index
    %75 = vector.load %arg11[%c24_64, %c0_65] : memref<72x384xf32, #tpu.memory_space<vmem>>, vector<8x384xf32>
    tpu.vector_store %arg11[%c24_64, %c0_65], %74 {strides = array<i32>} : memref<72x384xf32, #tpu.memory_space<vmem>>, vector<8x384xf32>,
    %c0_66 = arith.constant 0 : index
    %c128_67 = arith.constant 128 : index
    %76 = vector.load %arg10[%c0_66, %c128_67] : memref<8x640xf32, #tpu.memory_space<vmem>>, vector<8x384xf32>
    %c32_68 = arith.constant 32 : index
    %c0_69 = arith.constant 0 : index
    %77 = vector.load %arg11[%c32_68, %c0_69] : memref<72x384xf32, #tpu.memory_space<vmem>>, vector<8x384xf32>
    tpu.vector_store %arg11[%c32_68, %c0_69], %76 {strides = array<i32>} : memref<72x384xf32, #tpu.memory_space<vmem>>, vector<8x384xf32>,
    %c0_70 = arith.constant 0 : index
    %c129_71 = arith.constant 129 : index
    %78 = vector.load %arg10[%c0_70, %c129_71] : memref<8x640xf32, #tpu.memory_space<vmem>>, vector<8x384xf32>
    %c40_72 = arith.constant 40 : index
    %c0_73 = arith.constant 0 : index
    %79 = vector.load %arg11[%c40_72, %c0_73] : memref<72x384xf32, #tpu.memory_space<vmem>>, vector<8x384xf32>
    tpu.vector_store %arg11[%c40_72, %c0_73], %78 {strides = array<i32>} : memref<72x384xf32, #tpu.memory_space<vmem>>, vector<8x384xf32>,
    %c0_74 = arith.constant 0 : index
    %c145_75 = arith.constant 145 : index
    %80 = vector.load %arg10[%c0_74, %c145_75] : memref<8x640xf32, #tpu.memory_space<vmem>>, vector<8x384xf32>
    %c48_76 = arith.constant 48 : index
    %c0_77 = arith.constant 0 : index
    %81 = vector.load %arg11[%c48_76, %c0_77] : memref<72x384xf32, #tpu.memory_space<vmem>>, vector<8x384xf32>
    tpu.vector_store %arg11[%c48_76, %c0_77], %80 {strides = array<i32>} : memref<72x384xf32, #tpu.memory_space<vmem>>, vector<8x384xf32>,
    %c0_78 = arith.constant 0 : index
    %c146_79 = arith.constant 146 : index
    %82 = vector.load %arg10[%c0_78, %c146_79] : memref<8x640xf32, #tpu.memory_space<vmem>>, vector<8x384xf32>
    %c56_80 = arith.constant 56 : index
    %c0_81 = arith.constant 0 : index
    %83 = vector.load %arg11[%c56_80, %c0_81] : memref<72x384xf32, #tpu.memory_space<vmem>>, vector<8x384xf32>
    tpu.vector_store %arg11[%c56_80, %c0_81], %82 {strides = array<i32>} : memref<72x384xf32, #tpu.memory_space<vmem>>, vector<8x384xf32>,
    %c0_82 = arith.constant 0 : index
    %c147_83 = arith.constant 147 : index
    %84 = vector.load %arg10[%c0_82, %c147_83] : memref<8x640xf32, #tpu.memory_space<vmem>>, vector<8x384xf32>
    %c64_84 = arith.constant 64 : index
    %c0_85 = arith.constant 0 : index
    %85 = vector.load %arg11[%c64_84, %c0_85] : memref<72x384xf32, #tpu.memory_space<vmem>>, vector<8x384xf32>
    tpu.vector_store %arg11[%c64_84, %c0_85], %84 {strides = array<i32>} : memref<72x384xf32, #tpu.memory_space<vmem>>, vector<8x384xf32>,
    %c0_86 = arith.constant 0 : index
    %c0_87 = arith.constant 0 : index
    %86 = vector.load %arg7[%c0_86, %c0_87] : memref<8x72xf32, #tpu.memory_space<vmem>>, vector<8x72xf32>
    %c0_88 = arith.constant 0 : index
    %c0_89 = arith.constant 0 : index
    %87 = vector.load %arg11[%c0_88, %c0_89] : memref<72x384xf32, #tpu.memory_space<vmem>>, vector<72x384xf32>
    %cst_90 = arith.constant dense<0.000000e+00> : vector<8x384xf32>
    %88 = tpu.matmul %86, %87, %cst_90 {dimension_numbers = #tpu.dot_dimension_numbers<[1], [0], [0], [1], [0, 0, 1, 1], [], []>} : vector<8x72xf32>, vector<72x384xf32>, vector<8x384xf32> -> vector<8x384xf32>
    %c0_91 = arith.constant 0 : index
    %c0_92 = arith.constant 0 : index
    %89 = vector.load %arg8[%c0_91, %c0_92] : memref<8x1xf32, #tpu.memory_space<vmem>>, vector<8x1xf32>
    %90 = vector.broadcast %89 : vector<8x1xf32> to vector<8x384xf32>
    %91 = arith.addf %88, %90 : vector<8x384xf32>
    %cst_93 = arith.constant 5.000000e-01 : f32
    %92 = vector.broadcast %cst_93 : f32 to vector<8x384xf32>
    %93 = arith.mulf %92, %91 : vector<8x384xf32>
    %94 = math.tanh %93 : vector<8x384xf32>
    %cst_94 = arith.constant 5.000000e-01 : f32
    %95 = vector.broadcast %cst_94 : f32 to vector<8x384xf32>
    %96 = arith.mulf %95, %94 : vector<8x384xf32>
    %cst_95 = arith.constant 5.000000e-01 : f32
    %97 = vector.broadcast %cst_95 : f32 to vector<8x384xf32>
    %98 = arith.addf %96, %97 : vector<8x384xf32>
    %99 = arith.mulf %91, %98 : vector<8x384xf32>
    %c0_96 = arith.constant 0 : index
    %c0_97 = arith.constant 0 : index
    %c0_98 = arith.constant 0 : index
    %100 = vector.load %arg9[%c0_96, %c0_97, %c0_98] : memref<1x8x384xf32, #tpu.memory_space<vmem>>, vector<1x8x384xf32>
    %101 = vector.shape_cast %100 : vector<1x8x384xf32> to vector<8x384xf32>
    %102 = vector.shape_cast %99 : vector<8x384xf32> to vector<1x8x384xf32>
    tpu.vector_store %arg9[%c0_96, %c0_97, %c0_98], %102 {strides = array<i32>} : memref<1x8x384xf32, #tpu.memory_space<vmem>>, vector<1x8x384xf32>,
    return
  }
  func.func @transform_0(%arg0: i32) -> (i32, i32, i32) {
    %c0_i32 = arith.constant 0 : i32
    %c0_i32_0 = arith.constant 0 : i32
    %c0_i32_1 = arith.constant 0 : i32
    return %arg0, %c0_i32, %c0_i32_0 : i32, i32, i32
  }
  func.func @transform_1(%arg0: i32) -> (i32, i32) {
    %c0_i32 = arith.constant 0 : i32
    %c0_i32_0 = arith.constant 0 : i32
    %c0_i32_1 = arith.constant 0 : i32
    return %c0_i32, %c0_i32_0 : i32, i32
  }
  func.func @transform_2(%arg0: i32) -> (i32, i32) {
    %c0_i32 = arith.constant 0 : i32
    %c0_i32_0 = arith.constant 0 : i32
    %c0_i32_1 = arith.constant 0 : i32
    return %c0_i32, %c0_i32_0 : i32, i32
  }
  func.func @transform_3(%arg0: i32) -> (i32, i32) {
    %c0_i32 = arith.constant 0 : i32
    %c0_i32_0 = arith.constant 0 : i32
    %c0_i32_1 = arith.constant 0 : i32
    return %c0_i32, %c0_i32_0 : i32, i32
  }
  func.func @transform_4(%arg0: i32) -> (i32, i32) {
    %c0_i32 = arith.constant 0 : i32
    %c0_i32_0 = arith.constant 0 : i32
    %c0_i32_1 = arith.constant 0 : i32
    return %c0_i32, %c0_i32_0 : i32, i32
  }
  func.func @transform_5(%arg0: i32) -> (i32, i32) {
    %c0_i32 = arith.constant 0 : i32
    %c0_i32_0 = arith.constant 0 : i32
    %c0_i32_1 = arith.constant 0 : i32
    return %c0_i32, %c0_i32_0 : i32, i32
  }
  func.func @transform_6(%arg0: i32) -> (i32, i32) {
    %c0_i32 = arith.constant 0 : i32
    %c0_i32_0 = arith.constant 0 : i32
    %c0_i32_1 = arith.constant 0 : i32
    return %c0_i32, %c0_i32_0 : i32, i32
  }
  func.func @transform_7(%arg0: i32) -> (i32, i32) {
    %c0_i32 = arith.constant 0 : i32
    %c0_i32_0 = arith.constant 0 : i32
    %c0_i32_1 = arith.constant 0 : i32
    return %c0_i32, %c0_i32_0 : i32, i32
  }
  func.func @transform_8(%arg0: i32) -> (i32, i32, i32) {
    %c0_i32 = arith.constant 0 : i32
    %c0_i32_0 = arith.constant 0 : i32
    %c0_i32_1 = arith.constant 0 : i32
    return %arg0, %c0_i32, %c0_i32_0 : i32, i32, i32
  }
}

</mosaic_0001>

<llo_original>
// kernel: tpu_custom_call.1
$region0: #{tpu_custom_call.1}
  #allocation0 [shape = 'u32[]', space=smem, size = 0x4, offset = 0x4, fixed_abs, tag = 'smem constant byte address 0x4 - core index']
  #allocation1 [shape = 'u32[144,128]{1,0:T(1,128)}', space=vmem, size = 0x12000, scoped, tag = 'internal scratch']
  #allocation2 [shape = 'f32[8,640]{1,0:T(8,128)}', space=vmem, size = 0x5000, scoped, tag = 'scratch operand']
  #allocation3 [shape = 'f32[72,384]{1,0:T(8,128)}', space=vmem, size = 0x1b000, scoped, tag = 'scratch operand']
  %s0 = inlined_call_operand.hbm [shape: f32[2,8,384], index: 0, kind: input, shape index: {}]
  %s1 = inlined_call_operand.hbm [shape: f32[8,384], index: 1, kind: input, shape index: {}]
  %s2 = inlined_call_operand.hbm [shape: f32[8,384], index: 2, kind: input, shape index: {}]
  %s3 = inlined_call_operand.vmem [shape: f32[1,384], index: 3, kind: input, shape index: {}]
  %s4 = inlined_call_operand.vmem [shape: f32[8,72], index: 4, kind: input, shape index: {}]
  %s5 = inlined_call_operand.vmem [shape: f32[8,1], index: 5, kind: input, shape index: {}]
  %s6 = inlined_call_operand.vmem [shape: f32[8,72], index: 6, kind: input, shape index: {}]
  %s7 = inlined_call_operand.vmem [shape: f32[8,1], index: 7, kind: input, shape index: {}]
  %s8 = inlined_call_operand.hbm [shape: f32[2,8,384], index: 8, kind: output, shape index: {}]
  %s9 = sld [smem:[#allocation0]]
  $region77: #{tpu_custom_call.1} parent=0
    _
  %s11 = ssub.s32 1, %s9
  %s12 = scalar_select 0, %s11, %s9
  $region1: #{tpu_custom_call.1} parent=0
    #allocation4 [shape = 'u8[24576]{0}', space=vmem, size = 0x6000, scoped, tag = 'input window, operand 0']
    #allocation5 [shape = 's32[2]{0}', space=sflag, size = 0x8, scoped, tag = 'scoped memory for tpu_custom_call.1']
    #allocation6 [shape = 's32[2]{0}', space=sflag, size = 0x8, scoped, tag = 'scoped memory for tpu_custom_call.1']
    #allocation7 [shape = 'u8[12288]{0}', space=vmem, size = 0x3000, scoped, tag = 'input window, operand 1, single buffered']
    #allocation8 [shape = 's32[1]{0}', space=sflag, size = 0x4, scoped, tag = 'scoped memory for tpu_custom_call.1']
    #allocation9 [shape = 'u8[12288]{0}', space=vmem, size = 0x3000, scoped, tag = 'input window, operand 2, single buffered']
    #allocation10 [shape = 'u8[24576]{0}', space=vmem, size = 0x6000, scoped, tag = 'output window, operand 0']
    %13 = vsyncpa [#allocation5], 0
    %s14 = scalar_lea.sflag [#allocation5], 1
    %15 = vsyncpa %s14, 0
    %16 = vsyncpa [#allocation8], 0
    %17 = vsyncpa [#allocation6], 0
    %s18 = scalar_lea.sflag [#allocation6], 1
    %19 = vsyncpa %s18, 0
    loop: start=0, step=1, limit=4
    $region2: #{tpu_custom_call.1} parent=1 // loop_pre_header
      _
    $region3: #{tpu_custom_call.1} parent=1 // loop_header
      %s21 = sphi 0, %s25
      %p22 = scmp.ge.s32.totalorder %s21, 4
      %s31 = sphi 0, %s33
      %s34 = sphi 0, %s31
      %s35 = sphi 0, %s34
      %s51 = sphi 0, %s35
      %s55 = sphi 0, %s55
      %s57 = sphi 0, %s55
      %s58 = sphi 0, %s57
      %s72 = sphi 0, %s58
      %s76 = sphi 0, %s76
      %s78 = sphi 0, %s76
      %s79 = sphi 0, %s78
      %s93 = sphi 0, %s79
      %s97 = sphi 0, %s97
      %s99 = sphi 0, %s97
      %s100 = sphi 0, %s99
      %s114 = sphi 0, %s100
      %s118 = sphi 0, %s118
      %s120 = sphi 0, %s118
      %s121 = sphi 0, %s120
      %s135 = sphi 0, %s121
      %s139 = sphi 0, %s139
      %s141 = sphi 0, %s139
      %s142 = sphi 0, %s141
      %s156 = sphi 0, %s142
      %s160 = sphi 0, %s160
      %s162 = sphi 0, %s160
      %s163 = sphi 0, %s162
      %s177 = sphi 0, %s163
      %s181 = sphi 0, %s181
      %s183 = sphi 0, %s181
      %s184 = sphi 0, %s183
      %s198 = sphi 0, %s184
      %s204 = sphi 0, %s206
      %s207 = sphi 0, %s204
      %s208 = sphi 0, %s207
      %s224 = sphi 0, %s208
    $region4: #{tpu_custom_call.1} parent=1 // loop_header_branch
      %24 = sbr.rel (%p22) target = $region8
    $region5: #{tpu_custom_call.1} parent=1 // loop_body
      %s26 = ssub.s32 %s21, 1
      %s27 = ssub.s32 %s21, 2
      %s28 = sadd.s32 %s21, 1
      %s29 = ssub.s32 %s21, %s28
      %p30 = scmp.eq.s32.totalorder %s29, 0
      %s32 = sadd.s32 %s31, 1
      %s33 = scalar_select %p30, %s31, %s32
      %p36 = pneg %p30
      %p37 = scmp.eq.s32.totalorder %s21, 1
      %p38 = por %p36, %p37
      %p39 = scmp.ne.s32.totalorder %s31, %s34
      %p40 = scmp.eq.s32.totalorder %s21, 0
      %p41 = por %p39, %p40
      %p42 = scmp.ne.s32.totalorder %s31, %s34
      %p43 = scmp.eq.s32.totalorder %s26, 1
      %p44 = por %p42, %p43
      %p45 = scmp.ne.s32.totalorder %s34, %s35
      %p46 = scmp.eq.s32.totalorder %s26, 0
      %p47 = por %p45, %p46
      %p48 = scmp.ne.s32.totalorder %s34, %s35
      %p49 = scmp.eq.s32.totalorder %s27, 1
      %p50 = por %p48, %p49
      %p52 = scmp.ne.s32.totalorder %s35, %s51
      %p53 = scmp.eq.s32.totalorder %s27, 0
      %p54 = por %p52, %p53
      %s56 = sadd.s32 %s55, 1
      %p59 = scmp.eq.s32.totalorder %s21, 1
      %p60 = scmp.ne.s32.totalorder %s55, %s57
      %p61 = scmp.eq.s32.totalorder %s21, 0
      %p62 = por %p60, %p61
      %p63 = scmp.ne.s32.totalorder %s55, %s57
      %p64 = scmp.eq.s32.totalorder %s26, 1
      %p65 = por %p63, %p64
      %p66 = scmp.ne.s32.totalorder %s57, %s58
      %p67 = scmp.eq.s32.totalorder %s26, 0
      %p68 = por %p66, %p67
      %p69 = scmp.ne.s32.totalorder %s57, %s58
      %p70 = scmp.eq.s32.totalorder %s27, 1
      %p71 = por %p69, %p70
      %p73 = scmp.ne.s32.totalorder %s58, %s72
      %p74 = scmp.eq.s32.totalorder %s27, 0
      %p75 = por %p73, %p74
      %s77 = sadd.s32 %s76, 1
      %p80 = scmp.eq.s32.totalorder %s21, 1
      %p81 = scmp.ne.s32.totalorder %s76, %s78
      %p82 = scmp.eq.s32.totalorder %s21, 0
      %p83 = por %p81, %p82
      %p84 = scmp.ne.s32.totalorder %s76, %s78
      %p85 = scmp.eq.s32.totalorder %s26, 1
      %p86 = por %p84, %p85
      %p87 = scmp.ne.s32.totalorder %s78, %s79
      %p88 = scmp.eq.s32.totalorder %s26, 0
      %p89 = por %p87, %p88
      %p90 = scmp.ne.s32.totalorder %s78, %s79
      %p91 = scmp.eq.s32.totalorder %s27, 1
      %p92 = por %p90, %p91
      %p94 = scmp.ne.s32.totalorder %s79, %s93
      %p95 = scmp.eq.s32.totalorder %s27, 0
      %p96 = por %p94, %p95
      %s98 = sadd.s32 %s97, 1
      %p101 = scmp.eq.s32.totalorder %s21, 1
      %p102 = scmp.ne.s32.totalorder %s97, %s99
      %p103 = scmp.eq.s32.totalorder %s21, 0
      %p104 = por %p102, %p103
      %p105 = scmp.ne.s32.totalorder %s97, %s99
      %p106 = scmp.eq.s32.totalorder %s26, 1
      %p107 = por %p105, %p106
      %p108 = scmp.ne.s32.totalorder %s99, %s100
      %p109 = scmp.eq.s32.totalorder %s26, 0
      %p110 = por %p108, %p109
      %p111 = scmp.ne.s32.totalorder %s99, %s100
      %p112 = scmp.eq.s32.totalorder %s27, 1
      %p113 = por %p111, %p112
      %p115 = scmp.ne.s32.totalorder %s100, %s114
      %p116 = scmp.eq.s32.totalorder %s27, 0
      %p117 = por %p115, %p116
      %s119 = sadd.s32 %s118, 1
      %p122 = scmp.eq.s32.totalorder %s21, 1
      %p123 = scmp.ne.s32.totalorder %s118, %s120
      %p124 = scmp.eq.s32.totalorder %s21, 0
      %p125 = por %p123, %p124
      %p126 = scmp.ne.s32.totalorder %s118, %s120
      %p127 = scmp.eq.s32.totalorder %s26, 1
      %p128 = por %p126, %p127
      %p129 = scmp.ne.s32.totalorder %s120, %s121
      %p130 = scmp.eq.s32.totalorder %s26, 0
      %p131 = por %p129, %p130
      %p132 = scmp.ne.s32.totalorder %s120, %s121
      %p133 = scmp.eq.s32.totalorder %s27, 1
      %p134 = por %p132, %p133
      %p136 = scmp.ne.s32.totalorder %s121, %s135
      %p137 = scmp.eq.s32.totalorder %s27, 0
      %p138 = por %p136, %p137
      %s140 = sadd.s32 %s139, 1
      %p143 = scmp.eq.s32.totalorder %s21, 1
      %p144 = scmp.ne.s32.totalorder %s139, %s141
      %p145 = scmp.eq.s32.totalorder %s21, 0
      %p146 = por %p144, %p145
      %p147 = scmp.ne.s32.totalorder %s139, %s141
      %p148 = scmp.eq.s32.totalorder %s26, 1
      %p149 = por %p147, %p148
      %p150 = scmp.ne.s32.totalorder %s141, %s142
      %p151 = scmp.eq.s32.totalorder %s26, 0
      %p152 = por %p150, %p151
      %p153 = scmp.ne.s32.totalorder %s141, %s142
      %p154 = scmp.eq.s32.totalorder %s27, 1
      %p155 = por %p153, %p154
      %p157 = scmp.ne.s32.totalorder %s142, %s156
      %p158 = scmp.eq.s32.totalorder %s27, 0
      %p159 = por %p157, %p158
      %s161 = sadd.s32 %s160, 1
      %p164 = scmp.eq.s32.totalorder %s21, 1
      %p165 = scmp.ne.s32.totalorder %s160, %s162
      %p166 = scmp.eq.s32.totalorder %s21, 0
      %p167 = por %p165, %p166
      %p168 = scmp.ne.s32.totalorder %s160, %s162
      %p169 = scmp.eq.s32.totalorder %s26, 1
      %p170 = por %p168, %p169
      %p171 = scmp.ne.s32.totalorder %s162, %s163
      %p172 = scmp.eq.s32.totalorder %s26, 0
      %p173 = por %p171, %p172
      %p174 = scmp.ne.s32.totalorder %s162, %s163
      %p175 = scmp.eq.s32.totalorder %s27, 1
      %p176 = por %p174, %p175
      %p178 = scmp.ne.s32.totalorder %s163, %s177
      %p179 = scmp.eq.s32.totalorder %s27, 0
      %p180 = por %p178, %p179
      %s182 = sadd.s32 %s181, 1
      %p185 = scmp.eq.s32.totalorder %s21, 1
      %p186 = scmp.ne.s32.totalorder %s181, %s183
      %p187 = scmp.eq.s32.totalorder %s21, 0
      %p188 = por %p186, %p187
      %p189 = scmp.ne.s32.totalorder %s181, %s183
      %p190 = scmp.eq.s32.totalorder %s26, 1
      %p191 = por %p189, %p190
      %p192 = scmp.ne.s32.totalorder %s183, %s184
      %p193 = scmp.eq.s32.totalorder %s26, 0
      %p194 = por %p192, %p193
      %p195 = scmp.ne.s32.totalorder %s183, %s184
      %p196 = scmp.eq.s32.totalorder %s27, 1
      %p197 = por %p195, %p196
      %p199 = scmp.ne.s32.totalorder %s184, %s198
      %p200 = scmp.eq.s32.totalorder %s27, 0
      %p201 = por %p199, %p200
      %s202 = ssub.s32 %s21, %s28
      %p203 = scmp.eq.s32.totalorder %s202, 0
      %s205 = sadd.s32 %s204, 1
      %s206 = scalar_select %p203, %s204, %s205
      %p209 = pneg %p203
      %p210 = scmp.eq.s32.totalorder %s21, 1
      %p211 = por %p209, %p210
      %p212 = scmp.ne.s32.totalorder %s204, %s207
      %p213 = scmp.eq.s32.totalorder %s21, 0
      %p214 = por %p212, %p213
      %p215 = scmp.ne.s32.totalorder %s204, %s207
      %p216 = scmp.eq.s32.totalorder %s26, 1
      %p217 = por %p215, %p216
      %p218 = scmp.ne.s32.totalorder %s207, %s208
      %p219 = scmp.eq.s32.totalorder %s26, 0
      %p220 = por %p218, %p219
      %p221 = scmp.ne.s32.totalorder %s207, %s208
      %p222 = scmp.eq.s32.totalorder %s27, 1
      %p223 = por %p221, %p222
      %p225 = scmp.ne.s32.totalorder %s208, %s224
      %p226 = scmp.eq.s32.totalorder %s27, 0
      %p227 = por %p225, %p226
      %p228 = scmp.le.s32.totalorder 1, %s21
      %p229 = scmp.lt.s32.totalorder %s21, 3
      %p230 = pnand %p228, %p229
      %p231 = pneg %p230
      // Predicated region
      $region9: #{tpu_custom_call.1} parent=5 // pred_check
        _
      $region10: #{tpu_custom_call.1} parent=5 // pred_check_branch
        %233 = sbr.rel (%p230) target = $region12
      $region11: #{tpu_custom_call.1} parent=5 // pred_region
        %s234 = ssub.s32 %s21, 1
        // Predicated region
        $region13: #{tpu_custom_call.1} parent=11 // pred_check
          %p235 = pneg %p68
        $region14: #{tpu_custom_call.1} parent=11 // pred_check_branch
          %237 = sbr.rel (%p235) target = $region16
        $region15: #{tpu_custom_call.1} parent=11 // pred_region
          %s239 = ssub.s32 384, 384
          %240 = vsyncadd [#allocation8], %s239
          %s242 = sshll.u32 [#allocation7], 4
          %s243 = int_to_ptr.vmem [resolvable:$true] %s242
          %245 = dma.hbm_to_vmem [thread:$0]  %s1, 384, %s243, [#allocation8]
        $region16: #{tpu_custom_call.1} parent=11 // pred_fallthru
          _
        // Predicated region
        $region17: #{tpu_custom_call.1} parent=11 // pred_check
          %p246 = pneg %p89
        $region18: #{tpu_custom_call.1} parent=11 // pred_check_branch
          %248 = sbr.rel (%p246) target = $region20
        $region19: #{tpu_custom_call.1} parent=11 // pred_region
          %s250 = ssub.s32 384, 384
          %251 = vsyncadd [#allocation8], %s250
          %s253 = sshll.u32 [#allocation9], 4
          %s254 = int_to_ptr.vmem [resolvable:$true] %s253
          %256 = dma.hbm_to_vmem [thread:$0]  %s2, 384, %s254, [#allocation8]
        $region20: #{tpu_custom_call.1} parent=11 // pred_fallthru
          _
        // Predicated region
        $region21: #{tpu_custom_call.1} parent=11 // pred_check
          %p257 = pneg %p110
        $region22: #{tpu_custom_call.1} parent=11 // pred_check_branch
          %259 = sbr.rel (%p257) target = $region24
        $region23: #{tpu_custom_call.1} parent=11 // pred_region
          _
        $region24: #{tpu_custom_call.1} parent=11 // pred_fallthru
          _
        // Predicated region
        $region25: #{tpu_custom_call.1} parent=11 // pred_check
          %p260 = pneg %p131
        $region26: #{tpu_custom_call.1} parent=11 // pred_check_branch
          %262 = sbr.rel (%p260) target = $region28
        $region27: #{tpu_custom_call.1} parent=11 // pred_region
          _
        $region28: #{tpu_custom_call.1} parent=11 // pred_fallthru
          _
        // Predicated region
        $region29: #{tpu_custom_call.1} parent=11 // pred_check
          %p263 = pneg %p152
        $region30: #{tpu_custom_call.1} parent=11 // pred_check_branch
          %265 = sbr.rel (%p263) target = $region32
        $region31: #{tpu_custom_call.1} parent=11 // pred_region
          _
        $region32: #{tpu_custom_call.1} parent=11 // pred_fallthru
          _
        // Predicated region
        $region33: #{tpu_custom_call.1} parent=11 // pred_check
          %p266 = pneg %p173
        $region34: #{tpu_custom_call.1} parent=11 // pred_check_branch
          %268 = sbr.rel (%p266) target = $region36
        $region35: #{tpu_custom_call.1} parent=11 // pred_region
          _
        $region36: #{tpu_custom_call.1} parent=11 // pred_fallthru
          _
        // Predicated region
        $region37: #{tpu_custom_call.1} parent=11 // pred_check
          %p269 = pneg %p194
        $region38: #{tpu_custom_call.1} parent=11 // pred_check_branch
          %271 = sbr.rel (%p269) target = $region40
        $region39: #{tpu_custom_call.1} parent=11 // pred_region
          _
        $region40: #{tpu_custom_call.1} parent=11 // pred_fallthru
          _
      $region12: #{tpu_custom_call.1} parent=5 // pred_fallthru
        _
      %p272 = scmp.lt.s32.totalorder %s21, 2
      // Predicated region
      $region41: #{tpu_custom_call.1} parent=5 // pred_check
        %p273 = pneg %p272
      $region42: #{tpu_custom_call.1} parent=5 // pred_check_branch
        %275 = sbr.rel (%p273) target = $region44
      $region43: #{tpu_custom_call.1} parent=5 // pred_region
        // Predicated region
        $region45: #{tpu_custom_call.1} parent=43 // pred_check
          %p276 = pneg %p41
        $region46: #{tpu_custom_call.1} parent=43 // pred_check_branch
          %278 = sbr.rel (%p276) target = $region48
        $region47: #{tpu_custom_call.1} parent=43 // pred_region
          %s279 = sand.u32 %s31, 1
          %s280 = scalar_lea.sflag [#allocation5], %s279
          %s281 = sand.u32 %s31, 1
          %s282 = smul.addr %s281, 24
          %s283 = scalar_lea.vmem [#allocation4], %s282
          %s285 = ssub.s32 384, 384
          %286 = vsyncadd %s280, %s285
          %s287 = smul.addr %s21, 3
          %s288 = smul.addr %s287, 128
          %s289 = scalar_lea.hbm %s0, %s288
          %s291 = sshll.u32 %s283, 4
          %s292 = int_to_ptr.vmem [resolvable:$true] %s291
          %294 = dma.hbm_to_vmem [thread:$0]  %s289, 384, %s292, %s280
        $region48: #{tpu_custom_call.1} parent=43 // pred_fallthru
          _
      $region44: #{tpu_custom_call.1} parent=5 // pred_fallthru
        _
      %p295 = scmp.le.s32.totalorder 1, %s21
      %p296 = scmp.lt.s32.totalorder %s21, 3
      %p297 = pnand %p295, %p296
      %p298 = pneg %p297
      // Predicated region
      $region49: #{tpu_custom_call.1} parent=5 // pred_check
        _
      $region50: #{tpu_custom_call.1} parent=5 // pred_check_branch
        %300 = sbr.rel (%p297) target = $region52
      $region51: #{tpu_custom_call.1} parent=5 // pred_region
        %s301 = ssub.s32 %s21, 1
        %s302 = sand.u32 %s34, 1
        %s303 = scalar_lea.sflag [#allocation5], %s302
        %s304 = sand.u32 %s34, 1
        %s305 = smul.addr %s304, 24
        %s306 = scalar_lea.vmem [#allocation4], %s305
        // Predicated region
        $region53: #{tpu_custom_call.1} parent=51 // pred_check
          %p307 = pneg %p47
        $region54: #{tpu_custom_call.1} parent=51 // pred_check_branch
          %309 = sbr.rel (%p307) target = $region56
        $region55: #{tpu_custom_call.1} parent=51 // pred_region
          %310 = dma.done %s303, 384
        $region56: #{tpu_custom_call.1} parent=51 // pred_fallthru
          _
        // Predicated region
        $region57: #{tpu_custom_call.1} parent=51 // pred_check
          %p311 = pneg %p68
        $region58: #{tpu_custom_call.1} parent=51 // pred_check_branch
          %313 = sbr.rel (%p311) target = $region60
        $region59: #{tpu_custom_call.1} parent=51 // pred_region
          %314 = dma.done [#allocation8], 384
        $region60: #{tpu_custom_call.1} parent=51 // pred_fallthru
          _
        // Predicated region
        $region61: #{tpu_custom_call.1} parent=51 // pred_check
          %p315 = pneg %p89
        $region62: #{tpu_custom_call.1} parent=51 // pred_check_branch
          %317 = sbr.rel (%p315) target = $region64
        $region63: #{tpu_custom_call.1} parent=51 // pred_region
          %318 = dma.done [#allocation8], 384
        $region64: #{tpu_custom_call.1} parent=51 // pred_fallthru
          _
        %s319 = sand.u32 %s34, 1
        %s320 = scalar_lea.sflag [#allocation5], %s319
        %s321 = sand.u32 %s34, 1
        %s322 = smul.addr %s321, 24
        %s323 = scalar_lea.vmem [#allocation4], %s322
        %p324 = pneg %p47
        %p325 = pneg %p44
        %p326 = pneg %p68
        %p327 = pneg %p65
        %p328 = pneg %p89
        %p329 = pneg %p86
        %p330 = pneg %p110
        %p331 = pneg %p107
        %p332 = pneg %p131
        %p333 = pneg %p128
        %p334 = pneg %p152
        %p335 = pneg %p149
        %p336 = pneg %p173
        %p337 = pneg %p170
        %p338 = pneg %p194
        %p339 = pneg %p191
        %p340 = pneg %p220
        %p341 = pneg %p217
        %s342 = sand.u32 %s207, 1
        %s343 = scalar_lea.sflag [#allocation6], %s342
        %s344 = sand.u32 %s207, 1
        %s345 = smul.addr %s344, 24
        %s346 = scalar_lea.vmem [#allocation10], %s345
        %347 = vst [vmem:[#allocation2] sm:$0xff] 0.0
        %348 = vst [vmem:[#allocation2 + $0x8] sm:$0xff] 0.0
        %349 = vst [vmem:[#allocation2 + $0x10] sm:$0xff] 0.0
        %350 = vst [vmem:[#allocation2 + $0x18] sm:$0xff] 0.0
        %351 = vst [vmem:[#allocation2 + $0x20] sm:$0xff] 0.0
        %v352 = vld [vmem:[%s306] sm:$0xff]
        %v353 = vld [vmem:[%s306 + $0x8] sm:$0xff]
        %v354 = vld [vmem:[%s306 + $0x10] sm:$0xff]
        %v355 = vadd.f32 %v352, %v353
        %v356 = vadd.f32 %v355, %v354
        %357 = vadd.xlane.f32.xlu0 %v356
        %v358 = vpop.xlane.xlu0 %357
        %v359 = vrot.slane %v358, 4
        %v360 = vadd.f32 %v358, %v359
        %v361 = vrot.slane %v360, 2
        %v362 = vadd.f32 %v360, %v361
        %v363 = vrot.slane %v362, 1
        %v364 = vadd.f32 %v362, %v363
        %s365 = vtos %v364
        %v366 = vmul.f32 %v352, %v352
        %v367 = vmul.f32 %v353, %v353
        %v368 = vmul.f32 %v354, %v354
        %v369 = vadd.f32 %v366, %v367
        %v370 = vadd.f32 %v369, %v368
        %371 = vadd.xlane.f32.xlu0 %v370
        %v372 = vpop.xlane.xlu0 %371
        %v373 = vrot.slane %v372, 4
        %v374 = vadd.f32 %v372, %v373
        %v375 = vrot.slane %v374, 2
        %v376 = vadd.f32 %v374, %v375
        %v377 = vrot.slane %v376, 1
        %v378 = vadd.f32 %v376, %v377
        %s379 = vtos %v378
        %s380 = smul.f32 %s365, 0.0009765625
        %s381 = smul.f32 %s379, 0.0009765625
        %s382 = smul.f32 %s380, %s380
        %s383 = ssub.f32 %s381, %s382
        %s384 = sadd.f32 %s383, 1e-05
        %v385 = vstv %s384
        %v386 = vrsqrt.pop %v385
        %s387 = vtos %v386
        %v388 = vstv %s380
        %v389 = vsub.f32 %v352, %v388
        %v390 = vsub.f32 %v353, %v388
        %v391 = vsub.f32 %v354, %v388
        %v392 = vstv %s387
        %v393 = vmul.f32 %v389, %v392
        %v394 = vmul.f32 %v390, %v392
        %v395 = vmul.f32 %v391, %v392
        %v396 = vld [vmem:[#allocation7] sm:$0xff]
        %v397 = vld [vmem:[#allocation7 + $0x8] sm:$0xff]
        %v398 = vld [vmem:[#allocation7 + $0x10] sm:$0xff]
        %v399 = vmul.f32 %v393, %v396
        %v400 = vmul.f32 %v394, %v397
        %v401 = vmul.f32 %v395, %v398
        %v402 = vld [vmem:[#allocation9] sm:$0xff]
        %v403 = vld [vmem:[#allocation9 + $0x8] sm:$0xff]
        %v404 = vld [vmem:[#allocation9 + $0x10] sm:$0xff]
        %v405 = vadd.f32 %v399, %v402
        %v406 = vadd.f32 %v400, %v403
        %v407 = vadd.f32 %v401, %v404
        %408 = vst [vmem:[#allocation2 + $0x8] sm:$0xff] %v405
        %409 = vst [vmem:[#allocation2 + $0x10] sm:$0xff] %v406
        %410 = vst [vmem:[#allocation2 + $0x18] sm:$0xff] %v407
        %v411 = vld [vmem:[#allocation2] sm:$0xff]
        %v412 = vld [vmem:[#allocation2 + $0x8] sm:$0xff]
        %v413 = vld [vmem:[#allocation2 + $0x10] sm:$0xff]
        %v414 = vld [vmem:[#allocation2 + $0x18] sm:$0xff]
        %419 = vrot.lane.b32.xlu0 %v411, 19
        %v420 = vpop.permute.xlu0 %419
        %421 = vrot.lane.b32.xlu0 %v412, 19
        %v422 = vpop.permute.xlu0 %421
        %423 = vrot.lane.b32.xlu0 %v413, 19
        %v424 = vpop.permute.xlu0 %423
        %425 = vrot.lane.b32.xlu0 %v414, 19
        %v426 = vpop.permute.xlu0 %425
        %vm427 = vcmask 154624
        %v428 = vsel %vm427, %v420, %v422
        %v429 = vsel %vm427, %v422, %v424
        %v430 = vsel %vm427, %v424, %v426
        %434 = vst [vmem:[#allocation3] sm:$0xff] %v428
        %435 = vst [vmem:[#allocation3 + $0x8] sm:$0xff] %v429
        %436 = vst [vmem:[#allocation3 + $0x10] sm:$0xff] %v430
        %v437 = vld [vmem:[#allocation2] sm:$0xff]
        %v438 = vld [vmem:[#allocation2 + $0x8] sm:$0xff]
        %v439 = vld [vmem:[#allocation2 + $0x10] sm:$0xff]
        %v440 = vld [vmem:[#allocation2 + $0x18] sm:$0xff]
        %445 = vrot.lane.b32.xlu0 %v437, 18
        %v446 = vpop.permute.xlu0 %445
        %447 = vrot.lane.b32.xlu0 %v438, 18
        %v448 = vpop.permute.xlu0 %447
        %449 = vrot.lane.b32.xlu0 %v439, 18
        %v450 = vpop.permute.xlu0 %449
        %451 = vrot.lane.b32.xlu0 %v440, 18
        %v452 = vpop.permute.xlu0 %451
        %vm453 = vcmask 146432
        %v454 = vsel %vm453, %v446, %v448
        %v455 = vsel %vm453, %v448, %v450
        %v456 = vsel %vm453, %v450, %v452
        %460 = vst [vmem:[#allocation3 + $0x18] sm:$0xff] %v454
        %461 = vst [vmem:[#allocation3 + $0x20] sm:$0xff] %v455
        %462 = vst [vmem:[#allocation3 + $0x28] sm:$0xff] %v456
        %v463 = vld [vmem:[#allocation2] sm:$0xff]
        %v464 = vld [vmem:[#allocation2 + $0x8] sm:$0xff]
        %v465 = vld [vmem:[#allocation2 + $0x10] sm:$0xff]
        %v466 = vld [vmem:[#allocation2 + $0x18] sm:$0xff]
        %471 = vrot.lane.b32.xlu0 %v463, 17
        %v472 = vpop.permute.xlu0 %471
        %473 = vrot.lane.b32.xlu0 %v464, 17
        %v474 = vpop.permute.xlu0 %473
        %475 = vrot.lane.b32.xlu0 %v465, 17
        %v476 = vpop.permute.xlu0 %475
        %477 = vrot.lane.b32.xlu0 %v466, 17
        %v478 = vpop.permute.xlu0 %477
        %vm479 = vcmask 138240
        %v480 = vsel %vm479, %v472, %v474
        %v481 = vsel %vm479, %v474, %v476
        %v482 = vsel %vm479, %v476, %v478
        %486 = vst [vmem:[#allocation3 + $0x30] sm:$0xff] %v480
        %487 = vst [vmem:[#allocation3 + $0x38] sm:$0xff] %v481
        %488 = vst [vmem:[#allocation3 + $0x40] sm:$0xff] %v482
        %v489 = vld [vmem:[#allocation2] sm:$0xff]
        %v490 = vld [vmem:[#allocation2 + $0x8] sm:$0xff]
        %v491 = vld [vmem:[#allocation2 + $0x10] sm:$0xff]
        %v492 = vld [vmem:[#allocation2 + $0x18] sm:$0xff]
        %497 = vrot.lane.b32.xlu0 %v489, 1
        %v498 = vpop.permute.xlu0 %497
        %499 = vrot.lane.b32.xlu0 %v490, 1
        %v500 = vpop.permute.xlu0 %499
        %501 = vrot.lane.b32.xlu0 %v491, 1
        %v502 = vpop.permute.xlu0 %501
        %503 = vrot.lane.b32.xlu0 %v492, 1
        %v504 = vpop.permute.xlu0 %503
        %vm505 = vcmask 7168
        %v506 = vsel %vm505, %v498, %v500
        %v507 = vsel %vm505, %v500, %v502
        %v508 = vsel %vm505, %v502, %v504
        %512 = vst [vmem:[#allocation3 + $0x48] sm:$0xff] %v506
        %513 = vst [vmem:[#allocation3 + $0x50] sm:$0xff] %v507
        %514 = vst [vmem:[#allocation3 + $0x58] sm:$0xff] %v508
        %v515 = vld [vmem:[#allocation2 + $0x8] sm:$0xff]
        %v516 = vld [vmem:[#allocation2 + $0x10] sm:$0xff]
        %v517 = vld [vmem:[#allocation2 + $0x18] sm:$0xff]
        %518 = vst [vmem:[#allocation3 + $0x60] sm:$0xff] %v515
        %519 = vst [vmem:[#allocation3 + $0x68] sm:$0xff] %v516
        %520 = vst [vmem:[#allocation3 + $0x70] sm:$0xff] %v517
        %v521 = vld [vmem:[#allocation2 + $0x8] sm:$0xff]
        %v522 = vld [vmem:[#allocation2 + $0x10] sm:$0xff]
        %v523 = vld [vmem:[#allocation2 + $0x18] sm:$0xff]
        %v524 = vld [vmem:[#allocation2 + $0x20] sm:$0xff]
        %529 = vrot.lane.b32.xlu0 %v521, 127
        %v530 = vpop.permute.xlu0 %529
        %531 = vrot.lane.b32.xlu0 %v522, 127
        %v532 = vpop.permute.xlu0 %531
        %533 = vrot.lane.b32.xlu0 %v523, 127
        %v534 = vpop.permute.xlu0 %533
        %535 = vrot.lane.b32.xlu0 %v524, 127
        %v536 = vpop.permute.xlu0 %535
        %vm537 = vcmask 1039360
        %v538 = vsel %vm537, %v530, %v532
        %v539 = vsel %vm537, %v532, %v534
        %v540 = vsel %vm537, %v534, %v536
        %544 = vst [vmem:[#allocation3 + $0x78] sm:$0xff] %v538
        %545 = vst [vmem:[#allocation3 + $0x80] sm:$0xff] %v539
        %546 = vst [vmem:[#allocation3 + $0x88] sm:$0xff] %v540
        %v547 = vld [vmem:[#allocation2 + $0x8] sm:$0xff]
        %v548 = vld [vmem:[#allocation2 + $0x10] sm:$0xff]
        %v549 = vld [vmem:[#allocation2 + $0x18] sm:$0xff]
        %v550 = vld [vmem:[#allocation2 + $0x20] sm:$0xff]
        %555 = vrot.lane.b32.xlu0 %v547, 111
        %v556 = vpop.permute.xlu0 %555
        %557 = vrot.lane.b32.xlu0 %v548, 111
        %v558 = vpop.permute.xlu0 %557
        %559 = vrot.lane.b32.xlu0 %v549, 111
        %v560 = vpop.permute.xlu0 %559
        %561 = vrot.lane.b32.xlu0 %v550, 111
        %v562 = vpop.permute.xlu0 %561
        %vm563 = vcmask 908288
        %v564 = vsel %vm563, %v556, %v558
        %v565 = vsel %vm563, %v558, %v560
        %v566 = vsel %vm563, %v560, %v562
        %570 = vst [vmem:[#allocation3 + $0x90] sm:$0xff] %v564
        %571 = vst [vmem:[#allocation3 + $0x98] sm:$0xff] %v565
        %572 = vst [vmem:[#allocation3 + $0xa0] sm:$0xff] %v566
        %v573 = vld [vmem:[#allocation2 + $0x8] sm:$0xff]
        %v574 = vld [vmem:[#allocation2 + $0x10] sm:$0xff]
        %v575 = vld [vmem:[#allocation2 + $0x18] sm:$0xff]
        %v576 = vld [vmem:[#allocation2 + $0x20] sm:$0xff]
        %581 = vrot.lane.b32.xlu0 %v573, 110
        %v582 = vpop.permute.xlu0 %581
        %583 = vrot.lane.b32.xlu0 %v574, 110
        %v584 = vpop.permute.xlu0 %583
        %585 = vrot.lane.b32.xlu0 %v575, 110
        %v586 = vpop.permute.xlu0 %585
        %587 = vrot.lane.b32.xlu0 %v576, 110
        %v588 = vpop.permute.xlu0 %587
        %vm589 = vcmask 900096
        %v590 = vsel %vm589, %v582, %v584
        %v591 = vsel %vm589, %v584, %v586
        %v592 = vsel %vm589, %v586, %v588
        %596 = vst [vmem:[#allocation3 + $0xa8] sm:$0xff] %v590
        %597 = vst [vmem:[#allocation3 + $0xb0] sm:$0xff] %v591
        %598 = vst [vmem:[#allocation3 + $0xb8] sm:$0xff] %v592
        %v599 = vld [vmem:[#allocation2 + $0x8] sm:$0xff]
        %v600 = vld [vmem:[#allocation2 + $0x10] sm:$0xff]
        %v601 = vld [vmem:[#allocation2 + $0x18] sm:$0xff]
        %v602 = vld [vmem:[#allocation2 + $0x20] sm:$0xff]
        %607 = vrot.lane.b32.xlu0 %v599, 109
        %v608 = vpop.permute.xlu0 %607
        %609 = vrot.lane.b32.xlu0 %v600, 109
        %v610 = vpop.permute.xlu0 %609
        %611 = vrot.lane.b32.xlu0 %v601, 109
        %v612 = vpop.permute.xlu0 %611
        %613 = vrot.lane.b32.xlu0 %v602, 109
        %v614 = vpop.permute.xlu0 %613
        %vm615 = vcmask 891904
        %v616 = vsel %vm615, %v608, %v610
        %v617 = vsel %vm615, %v610, %v612
        %v618 = vsel %vm615, %v612, %v614
        %622 = vst [vmem:[#allocation3 + $0xc0] sm:$0xff] %v616
        %623 = vst [vmem:[#allocation3 + $0xc8] sm:$0xff] %v617
        %624 = vst [vmem:[#allocation3 + $0xd0] sm:$0xff] %v618
        %v625 = vld [vmem:[%s4] sm:$0xff]
        %v626 = vld [vmem:[#allocation3] sm:$0xff]
        %v627 = vld [vmem:[#allocation3 + $0x8] sm:$0xff]
        %v628 = vld [vmem:[#allocation3 + $0x10] sm:$0xff]
        %v629 = vld [vmem:[#allocation3 + $0x18] sm:$0xff]
        %v630 = vld [vmem:[#allocation3 + $0x20] sm:$0xff]
        %v631 = vld [vmem:[#allocation3 + $0x28] sm:$0xff]
        %v632 = vld [vmem:[#allocation3 + $0x30] sm:$0xff]
        %v633 = vld [vmem:[#allocation3 + $0x38] sm:$0xff]
        %v634 = vld [vmem:[#allocation3 + $0x40] sm:$0xff]
        %v635 = vld [vmem:[#allocation3 + $0x48] sm:$0xff]
        %v636 = vld [vmem:[#allocation3 + $0x50] sm:$0xff]
        %v637 = vld [vmem:[#allocation3 + $0x58] sm:$0xff]
        %v638 = vld [vmem:[#allocation3 + $0x60] sm:$0xff]
        %v639 = vld [vmem:[#allocation3 + $0x68] sm:$0xff]
        %v640 = vld [vmem:[#allocation3 + $0x70] sm:$0xff]
        %v641 = vld [vmem:[#allocation3 + $0x78] sm:$0xff]
        %v642 = vld [vmem:[#allocation3 + $0x80] sm:$0xff]
        %v643 = vld [vmem:[#allocation3 + $0x88] sm:$0xff]
        %v644 = vld [vmem:[#allocation3 + $0x90] sm:$0xff]
        %v645 = vld [vmem:[#allocation3 + $0x98] sm:$0xff]
        %v646 = vld [vmem:[#allocation3 + $0xa0] sm:$0xff]
        %v647 = vld [vmem:[#allocation3 + $0xa8] sm:$0xff]
        %v648 = vld [vmem:[#allocation3 + $0xb0] sm:$0xff]
        %v649 = vld [vmem:[#allocation3 + $0xb8] sm:$0xff]
        %v650 = vld [vmem:[#allocation3 + $0xc0] sm:$0xff]
        %v651 = vld [vmem:[#allocation3 + $0xc8] sm:$0xff]
        %v652 = vld [vmem:[#allocation3 + $0xd0] sm:$0xff]
        %v653 = vld [vmem:[%s5] sm:$0xff]
        %655 = vset.pattern.permute.xlu0 0
        %656 = vperm.xlu0 %655, %v653
        %v657 = vpop.permute.xlu0 %656
        %vm659 = vcmask 588800
        %v661 = vsel %vm659, %v625, 0
        %663 = vmatprep.subr.mxu0 0.0
        %664 = vmatpush1.msra.mxu0 0.0
        %665 = vmatprep.subr.mxu0 0.0
        %666 = vmatpush1.msra.mxu0 0.0
        %667 = vmatprep.subr.mxu0 0.0
        %668 = vmatpush1.msra.mxu0 0.0
        %669 = vmatprep.subr.mxu0 0.0
        %670 = vmatpush1.msra.mxu0 0.0
        %671 = vmatprep.subr.mxu0 0.0
        %672 = vmatpush1.msra.mxu0 0.0
        %673 = vmatprep.subr.mxu0 0.0
        %674 = vmatpush1.msra.mxu0 0.0
        %675 = vmatprep.subr.mxu0 0.0
        %676 = vmatpush1.msra.mxu0 0.0
        %677 = vmatprep.subr.mxu0 %v651
        %678 = vmatpush1.msra.mxu0 %v650
        %679 = vmatprep.subr.mxu0 %v648
        %680 = vmatpush1.msra.mxu0 %v647
        %681 = vmatprep.subr.mxu0 %v645
        %682 = vmatpush1.msra.mxu0 %v644
        %683 = vmatprep.subr.mxu0 %v642
        %684 = vmatpush1.msra.mxu0 %v641
        %685 = vmatprep.subr.mxu0 %v639
        %686 = vmatpush1.msra.mxu0 %v638
        %687 = vmatprep.subr.mxu0 %v636
        %688 = vmatpush1.msra.mxu0 %v635
        %689 = vmatprep.subr.mxu0 %v633
        %690 = vmatpush1.msra.mxu0 %v632
        %691 = vmatprep.subr.mxu0 %v630
        %692 = vmatpush1.msra.mxu0 %v629
        %693 = vmatprep.subr.mxu0 %v627
        %694 = vmatpush1.msra.mxu0 %v626
        %695 = vmatprep.subr.mxu0 0.0
        %696 = vmatpush2.msra.mxu0 0.0
        %697 = vmatprep.subr.mxu0 0.0
        %698 = vmatpush2.msra.mxu0 0.0
        %699 = vmatprep.subr.mxu0 0.0
        %700 = vmatpush2.msra.mxu0 0.0
        %701 = vmatprep.subr.mxu0 0.0
        %702 = vmatpush2.msra.mxu0 0.0
        %703 = vmatprep.subr.mxu0 0.0
        %704 = vmatpush2.msra.mxu0 0.0
        %705 = vmatprep.subr.mxu0 0.0
        %706 = vmatpush2.msra.mxu0 0.0
        %707 = vmatprep.subr.mxu0 0.0
        %708 = vmatpush2.msra.mxu0 0.0
        %709 = vmatprep.subr.mxu0 0.0
        %710 = vmatpush2.msra.mxu0 0.0
        %711 = vmatprep.subr.mxu0 0.0
        %712 = vmatpush2.msra.mxu0 0.0
        %713 = vmatprep.subr.mxu0 0.0
        %714 = vmatpush2.msra.mxu0 0.0
        %715 = vmatprep.subr.mxu0 0.0
        %716 = vmatpush2.msra.mxu0 0.0
        %717 = vmatprep.subr.mxu0 0.0
        %718 = vmatpush2.msra.mxu0 0.0
        %719 = vmatprep.subr.mxu0 0.0
        %720 = vmatpush2.msra.mxu0 0.0
        %721 = vmatprep.subr.mxu0 0.0
        %722 = vmatpush2.msra.mxu0 0.0
        %723 = vmatprep.subr.mxu0 0.0
        %724 = vmatpush2.msra.mxu0 0.0
        %725 = vmatprep.subr.mxu0 0.0
        %726 = vmatpush2.msra.mxu0 0.0
        %727 = vmatprep.mubr.f32.mxu0 0.0
        %728 = vmatmul.mubr.f32.gmra.mxu0 %v661
        %v729 = vpop.f32.mrf.mxu0
        %v730 = vadd.f32 %v657, %v729
        %v731 = vpop.f32.mrf.mxu0
        %v732 = vadd.f32 %v657, %v731
        %733 = vdwg.mxu0
        %734 = vmatprep.subr.mxu0 0.0
        %735 = vmatpush1.msra.mxu0 0.0
        %736 = vmatprep.subr.mxu0 0.0
        %737 = vmatpush1.msra.mxu0 0.0
        %738 = vmatprep.subr.mxu0 0.0
        %739 = vmatpush1.msra.mxu0 0.0
        %740 = vmatprep.subr.mxu0 0.0
        %741 = vmatpush1.msra.mxu0 0.0
        %742 = vmatprep.subr.mxu0 0.0
        %743 = vmatpush1.msra.mxu0 0.0
        %744 = vmatprep.subr.mxu0 0.0
        %745 = vmatpush1.msra.mxu0 0.0
        %746 = vmatprep.subr.mxu0 0.0
        %747 = vmatpush1.msra.mxu0 0.0
        %748 = vmatprep.subr.mxu0 0.0
        %749 = vmatpush1.msra.mxu0 %v652
        %750 = vmatprep.subr.mxu0 0.0
        %751 = vmatpush1.msra.mxu0 %v649
        %752 = vmatprep.subr.mxu0 0.0
        %753 = vmatpush1.msra.mxu0 %v646
        %754 = vmatprep.subr.mxu0 0.0
        %755 = vmatpush1.msra.mxu0 %v643
        %756 = vmatprep.subr.mxu0 0.0
        %757 = vmatpush1.msra.mxu0 %v640
        %758 = vmatprep.subr.mxu0 0.0
        %759 = vmatpush1.msra.mxu0 %v637
        %760 = vmatprep.subr.mxu0 0.0
        %761 = vmatpush1.msra.mxu0 %v634
        %762 = vmatprep.subr.mxu0 0.0
        %763 = vmatpush1.msra.mxu0 %v631
        %764 = vmatprep.subr.mxu0 0.0
        %765 = vmatpush1.msra.mxu0 %v628
        %766 = vmatprep.subr.mxu0 0.0
        %767 = vmatpush2.msra.mxu0 0.0
        %768 = vmatprep.subr.mxu0 0.0
        %769 = vmatpush2.msra.mxu0 0.0
        %770 = vmatprep.subr.mxu0 0.0
        %771 = vmatpush2.msra.mxu0 0.0
        %772 = vmatprep.subr.mxu0 0.0
        %773 = vmatpush2.msra.mxu0 0.0
        %774 = vmatprep.subr.mxu0 0.0
        %775 = vmatpush2.msra.mxu0 0.0
        %776 = vmatprep.subr.mxu0 0.0
        %777 = vmatpush2.msra.mxu0 0.0
        %778 = vmatprep.subr.mxu0 0.0
        %779 = vmatpush2.msra.mxu0 0.0
        %780 = vmatprep.subr.mxu0 0.0
        %781 = vmatpush2.msra.mxu0 0.0
        %782 = vmatprep.subr.mxu0 0.0
        %783 = vmatpush2.msra.mxu0 0.0
        %784 = vmatprep.subr.mxu0 0.0
        %785 = vmatpush2.msra.mxu0 0.0
        %786 = vmatprep.subr.mxu0 0.0
        %787 = vmatpush2.msra.mxu0 0.0
        %788 = vmatprep.subr.mxu0 0.0
        %789 = vmatpush2.msra.mxu0 0.0
        %790 = vmatprep.subr.mxu0 0.0
        %791 = vmatpush2.msra.mxu0 0.0
        %792 = vmatprep.subr.mxu0 0.0
        %793 = vmatpush2.msra.mxu0 0.0
        %794 = vmatprep.subr.mxu0 0.0
        %795 = vmatpush2.msra.mxu0 0.0
        %796 = vmatprep.subr.mxu0 0.0
        %797 = vmatpush2.msra.mxu0 0.0
        %798 = vmatprep.mubr.f32.mxu0 0.0
        %799 = vmatmul.mubr.f32.gmra.mxu0 %v661
        %v800 = vpop.f32.mrf.mxu0
        %v801 = vadd.f32 %v657, %v800
        %v802 = vpop.f32.mrf.mxu0
        %803 = vdwg.mxu0
        %v804 = vmul.f32 %v730, 0.5
        %v805 = vmul.f32 %v732, 0.5
        %v806 = vmul.f32 %v801, 0.5
        %v807 = vtanh.pop %v804
        %v808 = vtanh.pop %v805
        %v809 = vtanh.pop %v806
        %v810 = vmul.f32 %v807, 0.5
        %v811 = vmul.f32 %v808, 0.5
        %v812 = vmul.f32 %v809, 0.5
        %v813 = vadd.f32 %v810, 0.5
        %v814 = vadd.f32 %v811, 0.5
        %v815 = vadd.f32 %v812, 0.5
        %v816 = vmul.f32 %v730, %v813
        %v817 = vmul.f32 %v732, %v814
        %v818 = vmul.f32 %v801, %v815
        %v819 = vld [vmem:[%s3] sm:$0x7]
        %vm820 = vcmp.gt.f32.partialorder %v819, 0.5
        %v821 = vsel %vm820, 1, 0
        %v822 = vlaneseq
        %v823 = vshrl.u32 %v822, 7
        %v824 = vsub.s32 0, %v823
        %v825 = vrot.slane %v821, %v824
        %v826 = vlaneseq
        %v827 = vshrl.u32 %v826, 7
        %v828 = vsub.s32 1, %v827
        %v829 = vrot.slane %v821, %v828
        %v830 = vlaneseq
        %v831 = vshrl.u32 %v830, 7
        %v832 = vsub.s32 2, %v831
        %v833 = vrot.slane %v821, %v832
        %vm834 = vcmp.eq.s32.totalorder %v825, 1
        %vm835 = vcmp.eq.s32.totalorder %v829, 1
        %vm836 = vcmp.eq.s32.totalorder %v833, 1
        %v837 = vsel %vm834, %v816, 0.0
        %v838 = vsel %vm835, %v817, 0.0
        %v839 = vsel %vm836, %v818, 0.0
        %840 = vst [vmem:[#allocation2 + $0x8] sm:$0xff] %v837
        %841 = vst [vmem:[#allocation2 + $0x10] sm:$0xff] %v838
        %842 = vst [vmem:[#allocation2 + $0x18] sm:$0xff] %v839
        %v843 = vld [vmem:[#allocation2] sm:$0xff]
        %v844 = vld [vmem:[#allocation2 + $0x8] sm:$0xff]
        %v845 = vld [vmem:[#allocation2 + $0x10] sm:$0xff]
        %v846 = vld [vmem:[#allocation2 + $0x18] sm:$0xff]
        %851 = vrot.lane.b32.xlu0 %v843, 19
        %v852 = vpop.permute.xlu0 %851
        %853 = vrot.lane.b32.xlu0 %v844, 19
        %v854 = vpop.permute.xlu0 %853
        %855 = vrot.lane.b32.xlu0 %v845, 19
        %v856 = vpop.permute.xlu0 %855
        %857 = vrot.lane.b32.xlu0 %v846, 19
        %v858 = vpop.permute.xlu0 %857
        %v859 = vsel %vm427, %v852, %v854
        %v860 = vsel %vm427, %v854, %v856
        %v861 = vsel %vm427, %v856, %v858
        %865 = vst [vmem:[#allocation3] sm:$0xff] %v859
        %866 = vst [vmem:[#allocation3 + $0x8] sm:$0xff] %v860
        %867 = vst [vmem:[#allocation3 + $0x10] sm:$0xff] %v861
        %v868 = vld [vmem:[#allocation2] sm:$0xff]
        %v869 = vld [vmem:[#allocation2 + $0x8] sm:$0xff]
        %v870 = vld [vmem:[#allocation2 + $0x10] sm:$0xff]
        %v871 = vld [vmem:[#allocation2 + $0x18] sm:$0xff]
        %876 = vrot.lane.b32.xlu0 %v868, 18
        %v877 = vpop.permute.xlu0 %876
        %878 = vrot.lane.b32.xlu0 %v869, 18
        %v879 = vpop.permute.xlu0 %878
        %880 = vrot.lane.b32.xlu0 %v870, 18
        %v881 = vpop.permute.xlu0 %880
        %882 = vrot.lane.b32.xlu0 %v871, 18
        %v883 = vpop.permute.xlu0 %882
        %v884 = vsel %vm453, %v877, %v879
        %v885 = vsel %vm453, %v879, %v881
        %v886 = vsel %vm453, %v881, %v883
        %890 = vst [vmem:[#allocation3 + $0x18] sm:$0xff] %v884
        %891 = vst [vmem:[#allocation3 + $0x20] sm:$0xff] %v885
        %892 = vst [vmem:[#allocation3 + $0x28] sm:$0xff] %v886
        %v893 = vld [vmem:[#allocation2] sm:$0xff]
        %v894 = vld [vmem:[#allocation2 + $0x8] sm:$0xff]
        %v895 = vld [vmem:[#allocation2 + $0x10] sm:$0xff]
        %v896 = vld [vmem:[#allocation2 + $0x18] sm:$0xff]
        %901 = vrot.lane.b32.xlu0 %v893, 17
        %v902 = vpop.permute.xlu0 %901
        %903 = vrot.lane.b32.xlu0 %v894, 17
        %v904 = vpop.permute.xlu0 %903
        %905 = vrot.lane.b32.xlu0 %v895, 17
        %v906 = vpop.permute.xlu0 %905
        %907 = vrot.lane.b32.xlu0 %v896, 17
        %v908 = vpop.permute.xlu0 %907
        %v909 = vsel %vm479, %v902, %v904
        %v910 = vsel %vm479, %v904, %v906
        %v911 = vsel %vm479, %v906, %v908
        %915 = vst [vmem:[#allocation3 + $0x30] sm:$0xff] %v909
        %916 = vst [vmem:[#allocation3 + $0x38] sm:$0xff] %v910
        %917 = vst [vmem:[#allocation3 + $0x40] sm:$0xff] %v911
        %v918 = vld [vmem:[#allocation2] sm:$0xff]
        %v919 = vld [vmem:[#allocation2 + $0x8] sm:$0xff]
        %v920 = vld [vmem:[#allocation2 + $0x10] sm:$0xff]
        %v921 = vld [vmem:[#allocation2 + $0x18] sm:$0xff]
        %926 = vrot.lane.b32.xlu0 %v918, 1
        %v927 = vpop.permute.xlu0 %926
        %928 = vrot.lane.b32.xlu0 %v919, 1
        %v929 = vpop.permute.xlu0 %928
        %930 = vrot.lane.b32.xlu0 %v920, 1
        %v931 = vpop.permute.xlu0 %930
        %932 = vrot.lane.b32.xlu0 %v921, 1
        %v933 = vpop.permute.xlu0 %932
        %v934 = vsel %vm505, %v927, %v929
        %v935 = vsel %vm505, %v929, %v931
        %v936 = vsel %vm505, %v931, %v933
        %940 = vst [vmem:[#allocation3 + $0x48] sm:$0xff] %v934
        %941 = vst [vmem:[#allocation3 + $0x50] sm:$0xff] %v935
        %942 = vst [vmem:[#allocation3 + $0x58] sm:$0xff] %v936
        %v943 = vld [vmem:[#allocation2 + $0x8] sm:$0xff]
        %v944 = vld [vmem:[#allocation2 + $0x10] sm:$0xff]
        %v945 = vld [vmem:[#allocation2 + $0x18] sm:$0xff]
        %946 = vst [vmem:[#allocation3 + $0x60] sm:$0xff] %v943
        %947 = vst [vmem:[#allocation3 + $0x68] sm:$0xff] %v944
        %948 = vst [vmem:[#allocation3 + $0x70] sm:$0xff] %v945
        %v949 = vld [vmem:[#allocation2 + $0x8] sm:$0xff]
        %v950 = vld [vmem:[#allocation2 + $0x10] sm:$0xff]
        %v951 = vld [vmem:[#allocation2 + $0x18] sm:$0xff]
        %v952 = vld [vmem:[#allocation2 + $0x20] sm:$0xff]
        %957 = vrot.lane.b32.xlu0 %v949, 127
        %v958 = vpop.permute.xlu0 %957
        %959 = vrot.lane.b32.xlu0 %v950, 127
        %v960 = vpop.permute.xlu0 %959
        %961 = vrot.lane.b32.xlu0 %v951, 127
        %v962 = vpop.permute.xlu0 %961
        %963 = vrot.lane.b32.xlu0 %v952, 127
        %v964 = vpop.permute.xlu0 %963
        %v965 = vsel %vm537, %v958, %v960
        %v966 = vsel %vm537, %v960, %v962
        %v967 = vsel %vm537, %v962, %v964
        %971 = vst [vmem:[#allocation3 + $0x78] sm:$0xff] %v965
        %972 = vst [vmem:[#allocation3 + $0x80] sm:$0xff] %v966
        %973 = vst [vmem:[#allocation3 + $0x88] sm:$0xff] %v967
        %v974 = vld [vmem:[#allocation2 + $0x8] sm:$0xff]
        %v975 = vld [vmem:[#allocation2 + $0x10] sm:$0xff]
        %v976 = vld [vmem:[#allocation2 + $0x18] sm:$0xff]
        %v977 = vld [vmem:[#allocation2 + $0x20] sm:$0xff]
        %982 = vrot.lane.b32.xlu0 %v974, 111
        %v983 = vpop.permute.xlu0 %982
        %984 = vrot.lane.b32.xlu0 %v975, 111
        %v985 = vpop.permute.xlu0 %984
        %986 = vrot.lane.b32.xlu0 %v976, 111
        %v987 = vpop.permute.xlu0 %986
        %988 = vrot.lane.b32.xlu0 %v977, 111
        %v989 = vpop.permute.xlu0 %988
        %v990 = vsel %vm563, %v983, %v985
        %v991 = vsel %vm563, %v985, %v987
        %v992 = vsel %vm563, %v987, %v989
        %996 = vst [vmem:[#allocation3 + $0x90] sm:$0xff] %v990
        %997 = vst [vmem:[#allocation3 + $0x98] sm:$0xff] %v991
        %998 = vst [vmem:[#allocation3 + $0xa0] sm:$0xff] %v992
        %v999 = vld [vmem:[#allocation2 + $0x8] sm:$0xff]
        %v1000 = vld [vmem:[#allocation2 + $0x10] sm:$0xff]
        %v1001 = vld [vmem:[#allocation2 + $0x18] sm:$0xff]
        %v1002 = vld [vmem:[#allocation2 + $0x20] sm:$0xff]
        %1007 = vrot.lane.b32.xlu0 %v999, 110
        %v1008 = vpop.permute.xlu0 %1007
        %1009 = vrot.lane.b32.xlu0 %v1000, 110
        %v1010 = vpop.permute.xlu0 %1009
        %1011 = vrot.lane.b32.xlu0 %v1001, 110
        %v1012 = vpop.permute.xlu0 %1011
        %1013 = vrot.lane.b32.xlu0 %v1002, 110
        %v1014 = vpop.permute.xlu0 %1013
        %v1015 = vsel %vm589, %v1008, %v1010
        %v1016 = vsel %vm589, %v1010, %v1012
        %v1017 = vsel %vm589, %v1012, %v1014
        %1021 = vst [vmem:[#allocation3 + $0xa8] sm:$0xff] %v1015
        %1022 = vst [vmem:[#allocation3 + $0xb0] sm:$0xff] %v1016
        %1023 = vst [vmem:[#allocation3 + $0xb8] sm:$0xff] %v1017
        %v1024 = vld [vmem:[#allocation2 + $0x8] sm:$0xff]
        %v1025 = vld [vmem:[#allocation2 + $0x10] sm:$0xff]
        %v1026 = vld [vmem:[#allocation2 + $0x18] sm:$0xff]
        %v1027 = vld [vmem:[#allocation2 + $0x20] sm:$0xff]
        %1032 = vrot.lane.b32.xlu0 %v1024, 109
        %v1033 = vpop.permute.xlu0 %1032
        %1034 = vrot.lane.b32.xlu0 %v1025, 109
        %v1035 = vpop.permute.xlu0 %1034
        %1036 = vrot.lane.b32.xlu0 %v1026, 109
        %v1037 = vpop.permute.xlu0 %1036
        %1038 = vrot.lane.b32.xlu0 %v1027, 109
        %v1039 = vpop.permute.xlu0 %1038
        %v1040 = vsel %vm615, %v1033, %v1035
        %v1041 = vsel %vm615, %v1035, %v1037
        %v1042 = vsel %vm615, %v1037, %v1039
        %1046 = vst [vmem:[#allocation3 + $0xc0] sm:$0xff] %v1040
        %1047 = vst [vmem:[#allocation3 + $0xc8] sm:$0xff] %v1041
        %1048 = vst [vmem:[#allocation3 + $0xd0] sm:$0xff] %v1042
        %v1049 = vld [vmem:[%s6] sm:$0xff]
        %v1050 = vld [vmem:[#allocation3] sm:$0xff]
        %v1051 = vld [vmem:[#allocation3 + $0x8] sm:$0xff]
        %v1052 = vld [vmem:[#allocation3 + $0x10] sm:$0xff]
        %v1053 = vld [vmem:[#allocation3 + $0x18] sm:$0xff]
        %v1054 = vld [vmem:[#allocation3 + $0x20] sm:$0xff]
        %v1055 = vld [vmem:[#allocation3 + $0x28] sm:$0xff]
        %v1056 = vld [vmem:[#allocation3 + $0x30] sm:$0xff]
        %v1057 = vld [vmem:[#allocation3 + $0x38] sm:$0xff]
        %v1058 = vld [vmem:[#allocation3 + $0x40] sm:$0xff]
        %v1059 = vld [vmem:[#allocation3 + $0x48] sm:$0xff]
        %v1060 = vld [vmem:[#allocation3 + $0x50] sm:$0xff]
        %v1061 = vld [vmem:[#allocation3 + $0x58] sm:$0xff]
        %v1062 = vld [vmem:[#allocation3 + $0x60] sm:$0xff]
        %v1063 = vld [vmem:[#allocation3 + $0x68] sm:$0xff]
        %v1064 = vld [vmem:[#allocation3 + $0x70] sm:$0xff]
        %v1065 = vld [vmem:[#allocation3 + $0x78] sm:$0xff]
        %v1066 = vld [vmem:[#allocation3 + $0x80] sm:$0xff]
        %v1067 = vld [vmem:[#allocation3 + $0x88] sm:$0xff]
        %v1068 = vld [vmem:[#allocation3 + $0x90] sm:$0xff]
        %v1069 = vld [vmem:[#allocation3 + $0x98] sm:$0xff]
        %v1070 = vld [vmem:[#allocation3 + $0xa0] sm:$0xff]
        %v1071 = vld [vmem:[#allocation3 + $0xa8] sm:$0xff]
        %v1072 = vld [vmem:[#allocation3 + $0xb0] sm:$0xff]
        %v1073 = vld [vmem:[#allocation3 + $0xb8] sm:$0xff]
        %v1074 = vld [vmem:[#allocation3 + $0xc0] sm:$0xff]
        %v1075 = vld [vmem:[#allocation3 + $0xc8] sm:$0xff]
        %v1076 = vld [vmem:[#allocation3 + $0xd0] sm:$0xff]
        %v1077 = vld [vmem:[%s7] sm:$0xff]
        %1079 = vset.pattern.permute.xlu0 0
        %1080 = vperm.xlu0 %1079, %v1077
        %v1081 = vpop.permute.xlu0 %1080
        %v1084 = vsel %vm659, %v1049, 0
        %1086 = vmatprep.subr.mxu0 0.0
        %1087 = vmatpush1.msra.mxu0 0.0
        %1088 = vmatprep.subr.mxu0 0.0
        %1089 = vmatpush1.msra.mxu0 0.0
        %1090 = vmatprep.subr.mxu0 0.0
        %1091 = vmatpush1.msra.mxu0 0.0
        %1092 = vmatprep.subr.mxu0 0.0
        %1093 = vmatpush1.msra.mxu0 0.0
        %1094 = vmatprep.subr.mxu0 0.0
        %1095 = vmatpush1.msra.mxu0 0.0
        %1096 = vmatprep.subr.mxu0 0.0
        %1097 = vmatpush1.msra.mxu0 0.0
        %1098 = vmatprep.subr.mxu0 0.0
        %1099 = vmatpush1.msra.mxu0 0.0
        %1100 = vmatprep.subr.mxu0 %v1075
        %1101 = vmatpush1.msra.mxu0 %v1074
        %1102 = vmatprep.subr.mxu0 %v1072
        %1103 = vmatpush1.msra.mxu0 %v1071
        %1104 = vmatprep.subr.mxu0 %v1069
        %1105 = vmatpush1.msra.mxu0 %v1068
        %1106 = vmatprep.subr.mxu0 %v1066
        %1107 = vmatpush1.msra.mxu0 %v1065
        %1108 = vmatprep.subr.mxu0 %v1063
        %1109 = vmatpush1.msra.mxu0 %v1062
        %1110 = vmatprep.subr.mxu0 %v1060
        %1111 = vmatpush1.msra.mxu0 %v1059
        %1112 = vmatprep.subr.mxu0 %v1057
        %1113 = vmatpush1.msra.mxu0 %v1056
        %1114 = vmatprep.subr.mxu0 %v1054
        %1115 = vmatpush1.msra.mxu0 %v1053
        %1116 = vmatprep.subr.mxu0 %v1051
        %1117 = vmatpush1.msra.mxu0 %v1050
        %1118 = vmatprep.subr.mxu0 0.0
        %1119 = vmatpush2.msra.mxu0 0.0
        %1120 = vmatprep.subr.mxu0 0.0
        %1121 = vmatpush2.msra.mxu0 0.0
        %1122 = vmatprep.subr.mxu0 0.0
        %1123 = vmatpush2.msra.mxu0 0.0
        %1124 = vmatprep.subr.mxu0 0.0
        %1125 = vmatpush2.msra.mxu0 0.0
        %1126 = vmatprep.subr.mxu0 0.0
        %1127 = vmatpush2.msra.mxu0 0.0
        %1128 = vmatprep.subr.mxu0 0.0
        %1129 = vmatpush2.msra.mxu0 0.0
        %1130 = vmatprep.subr.mxu0 0.0
        %1131 = vmatpush2.msra.mxu0 0.0
        %1132 = vmatprep.subr.mxu0 0.0
        %1133 = vmatpush2.msra.mxu0 0.0
        %1134 = vmatprep.subr.mxu0 0.0
        %1135 = vmatpush2.msra.mxu0 0.0
        %1136 = vmatprep.subr.mxu0 0.0
        %1137 = vmatpush2.msra.mxu0 0.0
        %1138 = vmatprep.subr.mxu0 0.0
        %1139 = vmatpush2.msra.mxu0 0.0
        %1140 = vmatprep.subr.mxu0 0.0
        %1141 = vmatpush2.msra.mxu0 0.0
        %1142 = vmatprep.subr.mxu0 0.0
        %1143 = vmatpush2.msra.mxu0 0.0
        %1144 = vmatprep.subr.mxu0 0.0
        %1145 = vmatpush2.msra.mxu0 0.0
        %1146 = vmatprep.subr.mxu0 0.0
        %1147 = vmatpush2.msra.mxu0 0.0
        %1148 = vmatprep.subr.mxu0 0.0
        %1149 = vmatpush2.msra.mxu0 0.0
        %1150 = vmatprep.mubr.f32.mxu0 0.0
        %1151 = vmatmul.mubr.f32.gmra.mxu0 %v1084
        %v1152 = vpop.f32.mrf.mxu0
        %v1153 = vadd.f32 %v1081, %v1152
        %v1154 = vpop.f32.mrf.mxu0
        %v1155 = vadd.f32 %v1081, %v1154
        %1156 = vdwg.mxu0
        %1157 = vmatprep.subr.mxu0 0.0
        %1158 = vmatpush1.msra.mxu0 0.0
        %1159 = vmatprep.subr.mxu0 0.0
        %1160 = vmatpush1.msra.mxu0 0.0
        %1161 = vmatprep.subr.mxu0 0.0
        %1162 = vmatpush1.msra.mxu0 0.0
        %1163 = vmatprep.subr.mxu0 0.0
        %1164 = vmatpush1.msra.mxu0 0.0
        %1165 = vmatprep.subr.mxu0 0.0
        %1166 = vmatpush1.msra.mxu0 0.0
        %1167 = vmatprep.subr.mxu0 0.0
        %1168 = vmatpush1.msra.mxu0 0.0
        %1169 = vmatprep.subr.mxu0 0.0
        %1170 = vmatpush1.msra.mxu0 0.0
        %1171 = vmatprep.subr.mxu0 0.0
        %1172 = vmatpush1.msra.mxu0 %v1076
        %1173 = vmatprep.subr.mxu0 0.0
        %1174 = vmatpush1.msra.mxu0 %v1073
        %1175 = vmatprep.subr.mxu0 0.0
        %1176 = vmatpush1.msra.mxu0 %v1070
        %1177 = vmatprep.subr.mxu0 0.0
        %1178 = vmatpush1.msra.mxu0 %v1067
        %1179 = vmatprep.subr.mxu0 0.0
        %1180 = vmatpush1.msra.mxu0 %v1064
        %1181 = vmatprep.subr.mxu0 0.0
        %1182 = vmatpush1.msra.mxu0 %v1061
        %1183 = vmatprep.subr.mxu0 0.0
        %1184 = vmatpush1.msra.mxu0 %v1058
        %1185 = vmatprep.subr.mxu0 0.0
        %1186 = vmatpush1.msra.mxu0 %v1055
        %1187 = vmatprep.subr.mxu0 0.0
        %1188 = vmatpush1.msra.mxu0 %v1052
        %1189 = vmatprep.subr.mxu0 0.0
        %1190 = vmatpush2.msra.mxu0 0.0
        %1191 = vmatprep.subr.mxu0 0.0
        %1192 = vmatpush2.msra.mxu0 0.0
        %1193 = vmatprep.subr.mxu0 0.0
        %1194 = vmatpush2.msra.mxu0 0.0
        %1195 = vmatprep.subr.mxu0 0.0
        %1196 = vmatpush2.msra.mxu0 0.0
        %1197 = vmatprep.subr.mxu0 0.0
        %1198 = vmatpush2.msra.mxu0 0.0
        %1199 = vmatprep.subr.mxu0 0.0
        %1200 = vmatpush2.msra.mxu0 0.0
        %1201 = vmatprep.subr.mxu0 0.0
        %1202 = vmatpush2.msra.mxu0 0.0
        %1203 = vmatprep.subr.mxu0 0.0
        %1204 = vmatpush2.msra.mxu0 0.0
        %1205 = vmatprep.subr.mxu0 0.0
        %1206 = vmatpush2.msra.mxu0 0.0
        %1207 = vmatprep.subr.mxu0 0.0
        %1208 = vmatpush2.msra.mxu0 0.0
        %1209 = vmatprep.subr.mxu0 0.0
        %1210 = vmatpush2.msra.mxu0 0.0
        %1211 = vmatprep.subr.mxu0 0.0
        %1212 = vmatpush2.msra.mxu0 0.0
        %1213 = vmatprep.subr.mxu0 0.0
        %1214 = vmatpush2.msra.mxu0 0.0
        %1215 = vmatprep.subr.mxu0 0.0
        %1216 = vmatpush2.msra.mxu0 0.0
        %1217 = vmatprep.subr.mxu0 0.0
        %1218 = vmatpush2.msra.mxu0 0.0
        %1219 = vmatprep.subr.mxu0 0.0
        %1220 = vmatpush2.msra.mxu0 0.0
        %1221 = vmatprep.mubr.f32.mxu0 0.0
        %1222 = vmatmul.mubr.f32.gmra.mxu0 %v1084
        %v1223 = vpop.f32.mrf.mxu0
        %v1224 = vadd.f32 %v1081, %v1223
        %v1225 = vpop.f32.mrf.mxu0
        %1226 = vdwg.mxu0
        %v1227 = vmul.f32 %v1153, 0.5
        %v1228 = vmul.f32 %v1155, 0.5
        %v1229 = vmul.f32 %v1224, 0.5
        %v1230 = vtanh.pop %v1227
        %v1231 = vtanh.pop %v1228
        %v1232 = vtanh.pop %v1229
        %v1233 = vmul.f32 %v1230, 0.5
        %v1234 = vmul.f32 %v1231, 0.5
        %v1235 = vmul.f32 %v1232, 0.5
        %v1236 = vadd.f32 %v1233, 0.5
        %v1237 = vadd.f32 %v1234, 0.5
        %v1238 = vadd.f32 %v1235, 0.5
        %v1239 = vmul.f32 %v1153, %v1236
        %v1240 = vmul.f32 %v1155, %v1237
        %v1241 = vmul.f32 %v1224, %v1238
        %1242 = vst [vmem:[%s346] sm:$0xff] %v1239
        %1243 = vst [vmem:[%s346 + $0x8] sm:$0xff] %v1240
        %1244 = vst [vmem:[%s346 + $0x10] sm:$0xff] %v1241
        %s1245 = sand.u32 %s207, 1
        %s1246 = scalar_lea.sflag [#allocation6], %s1245
        %s1247 = sand.u32 %s207, 1
        %s1248 = smul.addr %s1247, 24
        %s1249 = scalar_lea.vmem [#allocation10], %s1248
        // Predicated region
        $region65: #{tpu_custom_call.1} parent=51 // pred_check
          %p1250 = pneg %p217
        $region66: #{tpu_custom_call.1} parent=51 // pred_check_branch
          %1252 = sbr.rel (%p1250) target = $region68
        $region67: #{tpu_custom_call.1} parent=51 // pred_region
          %s1254 = ssub.s32 384, 384
          %1255 = vsyncadd %s1246, %s1254
          %s1256 = smul.addr %s26, 3
          %s1257 = smul.addr %s1256, 128
          %s1258 = scalar_lea.hbm %s8, %s1257
          %s1260 = sshll.u32 %s1249, 4
          %s1261 = int_to_ptr.vmem [resolvable:$true] %s1260
          %1263 = dma.vmem_to_hbm [thread:$0]  %s1261, 384, %s1258, %s1246
        $region68: #{tpu_custom_call.1} parent=51 // pred_fallthru
          _
      $region52: #{tpu_custom_call.1} parent=5 // pred_fallthru
        _
      %p1264 = scmp.le.s32.totalorder 2, %s21
      // Predicated region
      $region69: #{tpu_custom_call.1} parent=5 // pred_check
        %p1265 = pneg %p1264
      $region70: #{tpu_custom_call.1} parent=5 // pred_check_branch
        %1267 = sbr.rel (%p1265) target = $region72
      $region71: #{tpu_custom_call.1} parent=5 // pred_region
        %s1268 = ssub.s32 %s21, 2
        // Predicated region
        $region73: #{tpu_custom_call.1} parent=71 // pred_check
          %p1269 = pneg %p223
        $region74: #{tpu_custom_call.1} parent=71 // pred_check_branch
          %1271 = sbr.rel (%p1269) target = $region76
        $region75: #{tpu_custom_call.1} parent=71 // pred_region
          %s1272 = sand.u32 %s208, 1
          %s1273 = scalar_lea.sflag [#allocation6], %s1272
          %s1274 = sand.u32 %s208, 1
          %s1275 = smul.addr %s1274, 24
          %s1276 = scalar_lea.vmem [#allocation10], %s1275
          %1277 = dma.done %s1273, 384
        $region76: #{tpu_custom_call.1} parent=71 // pred_fallthru
          _
      $region72: #{tpu_custom_call.1} parent=5 // pred_fallthru
        _
    $region6: #{tpu_custom_call.1} parent=1 // loop_footer
      %s25 = sadd.s32 1, %s21
    $region7: #{tpu_custom_call.1} parent=1 // loop_footer_branch
      %20 = sbr.rel target = $region3
    $region8: #{tpu_custom_call.1} parent=1 // loop_exit
      _
    %1278 = vsyncpa [#allocation5], 1
    %s1279 = scalar_lea.sflag [#allocation5], 1
    %1280 = vsyncpa %s1279, 1
    %1281 = vsyncpa [#allocation8], 1
    %1282 = vsyncpa [#allocation6], 1
    %s1283 = scalar_lea.sflag [#allocation6], 1
    %1284 = vsyncpa %s1283, 1

</llo_original>
